<compile_context>
chip_gen: v6e
topology: v6e:2x2x1
jax: 0.10.0
libtpu: 0.0.40
codegen_flags: <defaults>
</compile_context>

<pallas_src>
import math
from functools import partial

import jax
import jax.numpy as jnp
from jax.experimental import pallas as pl
from jax.experimental.pallas import tpu as pltpu

# ----------------------------- config (cfg) ---------------------------------
B = 2                 # batch
T = 2                 # frames
MAX_N = 4             # cfg.num_boxes
K = 2                 # cfg.crop_size[0]
D_EMB = 16            # cfg.emb_features
KKD = K * K * D_EMB   # input dim of fc_emb_1 (= 64)
NFB = 32              # cfg.num_features_boxes
NFG = 32              # cfg.num_features_gcn  (== NFB, required by the model)
NFR = 16              # cfg.num_features_relation
NG = 2                # cfg.num_graph
GCN_LAYERS = 1        # cfg.gcn_layers
NUM_ACTIONS = 8       # cfg.num_actions
NUM_ACTIVITIES = 6    # cfg.num_activities
OH, OW = 8, 8         # cfg.out_size
POS_THRESHOLD = 0.2   # cfg.pos_threshold
LN_EPS = 1e-5

TN = T * MAX_N
HEAD_LANES = 128                       # lane-dense output / padded head weights
OUT_ROWS = 8                           # >= MAX_N + 1, sublane multiple
NEG_BIG = -1e9                         # finite "masked" logit (robust vs -inf)
assert OUT_ROWS >= MAX_N + 1


# ----------------------------- fused Pallas kernel ---------------------------
def fused_kernel(roi_ref, boxes_ref,
                 emb_w_ref, emb_b_ref, emb_g_ref, emb_beta_ref,
                 thph_w_ref, thph_b_ref, gc_w_ref, ln_g_ref, ln_b_ref,
                 act_w_ref, act_b_ref, acty_w_ref, acty_b_ref,
                 out_ref, *, t, n, ng, nfr, nfg, gcn_layers, out_rows, out_lanes):
    tn = t * n

    # ---- fc_emb_1 -> LayerNorm([NFB]) -> ReLU --------------------------------
    xin = roi_ref[...]                                                # [TN, KKD]
    y = jnp.dot(xin, emb_w_ref[...],
                preferred_element_type=jnp.float32) + emb_b_ref[...]
    mu = jnp.mean(y, axis=-1, keepdims=True)
    var = jnp.mean((y - mu) ** 2, axis=-1, keepdims=True)
    y = (y - mu) * jax.lax.rsqrt(var + LN_EPS)
    x = jnp.maximum(y * emb_g_ref[...] + emb_beta_ref[...], 0.0)      # [TN, NFG]

    # ---- position mask (in-kernel, single K=4 matmul, no transpose) ----------
    box = boxes_ref[...]                                              # [TN, 4]
    cx = (box[:, 0:1] + box[:, 2:3]) * 0.5                            # [TN, 1]
    cy = (box[:, 1:2] + box[:, 3:4]) * 0.5
    sq = cx * cx + cy * cy
    ones_col = jnp.ones((tn, 1), jnp.float32)
    a = jnp.concatenate([cx, cy, sq, ones_col], axis=1)               # [TN, 4]
    b = jnp.concatenate([-2.0 * cx, -2.0 * cy, ones_col, sq], axis=1) # [TN, 4]
    # dist2[i, j] = |c_i|^2 + |c_j|^2 - 2 c_i . c_j
    dist2 = jax.lax.dot_general(a, b, (((1,), (1,)), ((), ())),
                                preferred_element_type=jnp.float32)   # [TN, TN]
    masked = dist2 > (POS_THRESHOLD * OW) ** 2

    # ---- GCN layers (PyTorch quirk: every layer consumes the ORIGINAL x) -----
    inv_sqrt_nfr = 1.0 / math.sqrt(nfr)
    graph = jnp.zeros_like(x)
    for l in range(gcn_layers):
        # one wide matmul producing all NG thetas and phis, one producing x@Wgcn
        thph = jnp.dot(x, thph_w_ref[l],
                       preferred_element_type=jnp.float32) + thph_b_ref[l]  # [TN, 2*NG*NFR]
        xgc = jnp.dot(x, gc_w_ref[l],
                      preferred_element_type=jnp.float32)                   # [TN, NG*NFG]
        ln_g = ln_g_ref[l]                                                  # [NG, NFG]
        ln_b = ln_b_ref[l]
        acc = jnp.zeros_like(x)
        for i in range(ng):
            theta = thph[:, i * nfr:(i + 1) * nfr]                          # [TN, NFR]
            phi = thph[:, (ng + i) * nfr:(ng + i + 1) * nfr]                # [TN, NFR]
            sim = jax.lax.dot_general(theta, phi, (((1,), (1,)), ((), ())),
                                      preferred_element_type=jnp.float32)
            sim = sim * inv_sqrt_nfr
            sim = jnp.where(masked, NEG_BIG, sim)
            m = jnp.max(sim, axis=-1, keepdims=True)
            e = jnp.exp(sim - m)
            rel = e * pl.reciprocal(jnp.sum(e, axis=-1, keepdims=True),
                                    approx=True)                            # softmax dim=2
            feat = jnp.dot(rel, xgc[:, i * nfg:(i + 1) * nfg],
                           preferred_element_type=jnp.float32)              # [TN, NFG]
            # collective dataset -> LayerNorm([NFG_ONE]) over the last dim
            mu_f = jnp.mean(feat, axis=-1, keepdims=True)
            var_f = jnp.mean((feat - mu_f) ** 2, axis=-1, keepdims=True)
            feat = (feat - mu_f) * jax.lax.rsqrt(var_f + LN_EPS)
            feat = feat * ln_g[i:i + 1, :] + ln_b[i:i + 1, :]
            acc = acc + jnp.maximum(feat, 0.0)
        graph = acc     # only the last layer's output survives (as in PyTorch)

    # ---- heads ----------------------------------------------------------------
    # TODO(synk): dropout_global applied as identity (eval / p=0 semantics).
    states = graph + x                                                # [TN, NFG]
    actn = jnp.dot(states, act_w_ref[...],
                   preferred_element_type=jnp.float32) + act_b_ref[...]      # [TN, 128]
    # mean over frames (rows are t-major), unrolled
    actn_sum = actn[0:n, :]
    for tt in range(1, t):
        actn_sum = actn_sum + actn[tt * n:(tt + 1) * n, :]
    actn_mean = actn_sum * (1.0 / t)                                  # [N, 128]

    # max over boxes per frame, unrolled static row slices (no 3-D reshape)
    pooled_rows = []
    for tt in range(t):
        pm = states[tt * n:tt * n + 1, :]
        for nn in range(1, n):
            pm = jnp.maximum(pm, states[tt * n + nn:tt * n + nn + 1, :])
        pooled_rows.append(pm)
    pooled = jnp.concatenate(pooled_rows, axis=0)                     # [T, NFG]
    acty = jnp.dot(pooled, acty_w_ref[...],
                   preferred_element_type=jnp.float32) + acty_b_ref[...]     # [T, 128]
    acty_sum = acty[0:1, :]
    for tt in range(1, t):
        acty_sum = acty_sum + acty[tt:tt + 1, :]
    acty_mean = acty_sum * (1.0 / t)                                  # [1, 128]

    # lane-dense packed output slab: rows [0:N)=actions, row N=activity, rest 0
    pad_rows = out_rows - n - 1
    pieces = [actn_mean, acty_mean]
    if pad_rows > 0:
        pieces.append(jnp.zeros((pad_rows, out_lanes), jnp.float32))
    out_ref[...] = jnp.concatenate(pieces, axis=0)


# ----------------------------- pallas_call wrapper ----------------------------
def run_fused(roi, boxes, p):
    L = GCN_LAYERS
    kern = partial(fused_kernel, t=T, n=MAX_N, ng=NG, nfr=NFR, nfg=NFG,
                   gcn_layers=L, out_rows=OUT_ROWS, out_lanes=HEAD_LANES)
    in_specs = [
        pl.BlockSpec((None, TN, KKD), lambda b: (b, 0, 0)),          # roi features
        pl.BlockSpec((None, TN, 4), lambda b: (b, 0, 0)),            # boxes
        # weights: constant index_maps -> stay VMEM-resident across the B grid
        pl.BlockSpec((KKD, NFB), lambda b: (0, 0)),                  # emb_w
        pl.BlockSpec((1, NFB), lambda b: (0, 0)),                    # emb_b
        pl.BlockSpec((1, NFB), lambda b: (0, 0)),                    # emb_g
        pl.BlockSpec((1, NFB), lambda b: (0, 0)),                    # emb_beta
        pl.BlockSpec((L, NFG, 2 * NG * NFR), lambda b: (0, 0, 0)),   # thph_w (stacked)
        pl.BlockSpec((L, 1, 2 * NG * NFR), lambda b: (0, 0, 0)),     # thph_b
        pl.BlockSpec((L, NFG, NG * NFG), lambda b: (0, 0, 0)),       # gc_w (stacked)
        pl.BlockSpec((L, NG, NFG), lambda b: (0, 0, 0)),             # ln_g
        pl.BlockSpec((L, NG, NFG), lambda b: (0, 0, 0)),             # ln_b
        pl.BlockSpec((NFG, HEAD_LANES), lambda b: (0, 0)),           # act_w (padded)
        pl.BlockSpec((1, HEAD_LANES), lambda b: (0, 0)),             # act_b
        pl.BlockSpec((NFG, HEAD_LANES), lambda b: (0, 0)),           # acty_w (padded)
        pl.BlockSpec((1, HEAD_LANES), lambda b: (0, 0)),             # acty_b
    ]
    out_specs = pl.BlockSpec((None, OUT_ROWS, HEAD_LANES), lambda b: (b, 0, 0))
    return pl.pallas_call(
        kern,
        out_shape=jax.ShapeDtypeStruct((B, OUT_ROWS, HEAD_LANES), jnp.float32),
        grid=(B,),
        in_specs=in_specs,
        out_specs=out_specs,
        compiler_params=pltpu.CompilerParams(
            dimension_semantics=("parallel",)),                      # 2x on v7x dual-TC
    )(roi, boxes,
      p['emb_w'], p['emb_b'], p['emb_g'], p['emb_beta'],
      p['thph_w'], p['thph_b'], p['gc_w'], p['ln_g'], p['ln_b'],
      p['act_w'], p['act_b'], p['acty_w'], p['acty_b'])


# ----------------------------- parameters ------------------------------------
def init_params(key):
    keys = iter(jax.random.split(key, 64))

    def lin(in_f, out_f):
        # nn.init.kaiming_normal_ on a [out, in] weight; stored here as [in, out].
        w = jax.random.normal(next(keys), (out_f, in_f), jnp.float32) * math.sqrt(2.0 / in_f)
        return jnp.transpose(w)

    def pad_lanes(w):  # [in, out] -> [in, HEAD_LANES] zero-padded
        return jnp.zeros((w.shape[0], HEAD_LANES), jnp.float32).at[:, :w.shape[1]].set(w)

    thph_w, gc_w = [], []
    for _ in range(GCN_LAYERS):
        thetas = [lin(NFG, NFR) for _ in range(NG)]
        phis = [lin(NFG, NFR) for _ in range(NG)]
        thph_w.append(jnp.concatenate(thetas + phis, axis=1))        # [NFG, 2*NG*NFR]
        gc_w.append(jnp.concatenate([lin(NFG, NFG) for _ in range(NG)], axis=1))

    p = {
        'emb_w': lin(KKD, NFB),
        'emb_b': jnp.zeros((1, NFB), jnp.float32),
        'emb_g': jnp.ones((1, NFB), jnp.float32),
        'emb_beta': jnp.zeros((1, NFB), jnp.float32),
        'thph_w': jnp.stack(thph_w),                                 # [L, NFG, 2*NG*NFR]
        'thph_b': jnp.zeros((GCN_LAYERS, 1, 2 * NG * NFR), jnp.float32),
        'gc_w': jnp.stack(gc_w),                                     # [L, NFG, NG*NFG]
        'ln_g': jnp.ones((GCN_LAYERS, NG, NFG), jnp.float32),
        'ln_b': jnp.zeros((GCN_LAYERS, NG, NFG), jnp.float32),
        'act_w': pad_lanes(lin(NFG, NUM_ACTIONS)),                   # [NFG, 128]
        'act_b': jnp.zeros((1, HEAD_LANES), jnp.float32),
        'acty_w': pad_lanes(lin(NFG, NUM_ACTIVITIES)),               # [NFG, 128]
        'acty_b': jnp.zeros((1, HEAD_LANES), jnp.float32),
    }
    # NOTE: fc_gcn_knn_list is unused in the PyTorch forward -> not materialized.
    return p


# ----------------------------- forward (jitted) -------------------------------
@jax.jit
def gcnnet_collective_forward(roi_features, boxes_in, bboxes_num_in, params):
    """
    roi_features : [B*T, MAX_N, K*K*D]  (stand-in for backbone+RoIAlign output)
    boxes_in     : [B, T, MAX_N, 4]     (x1, y1, x2, y2) in out_size coordinates
    bboxes_num_in: [B, T]
    returns (actions_scores [B*MAX_N, num_actions],
             activities_scores [B, num_activities])
    """
    del bboxes_num_in  # TODO(synk): dynamic box counts < MAX_N not supported (static shapes).
    roi = roi_features.reshape(B, TN, KKD)
    boxes = boxes_in.reshape(B, TN, 4)
    slab = run_fused(roi, boxes, params)                             # [B, 8, 128]
    actions = slab[:, :MAX_N, :NUM_ACTIONS].reshape(B * MAX_N, NUM_ACTIONS)
    activities = slab[:, MAX_N, :NUM_ACTIVITIES]                     # [B, NUM_ACTIVITIES]
    return actions, activities


# ----------------------------- main -------------------------------------------
if __name__ == "__main__":
    key = jax.random.PRNGKey(0)
    k_feat, k_box, k_param = jax.random.split(key, 3)

    # TODO(synk): MyInception_v3 (pretrained), prep_images, bilinear multiscale
    # interpolation and RoIAlign are not reproduced; we synthesize the ROI-pooled
    # features that feed fc_emb_1 directly.
    roi_features = jax.random.normal(k_feat, (B * T, MAX_N, KKD), jnp.float32)
    boxes_in = jax.random.uniform(k_box, (B, T, MAX_N, 4), jnp.float32,
                                  minval=0.0, maxval=float(OW))
    bboxes_num_in = jnp.full((B, T), MAX_N, jnp.int32)

    params = init_params(k_param)

    actions_scores, activities_scores = gcnnet_collective_forward(
        roi_features, boxes_in, bboxes_num_in, params)
    jax.block_until_ready((actions_scores, activities_scores))

    assert actions_scores.shape == (B * MAX_N, NUM_ACTIONS)
    assert activities_scores.shape == (B, NUM_ACTIVITIES)
    assert bool(jnp.all(jnp.isfinite(actions_scores)))
    assert bool(jnp.all(jnp.isfinite(activities_scores)))
    print("KERNEL_OK")
</pallas_src>

<mosaic_0001>
module attributes {stable_mosaic.version = 11 : i64} {
  func.func @fused_kernel(%arg0: i32, %arg1: memref<1x8x64xf32, #tpu.memory_space<vmem>>, %arg2: memref<1x8x4xf32, #tpu.memory_space<vmem>>, %arg3: memref<64x32xf32, #tpu.memory_space<vmem>>, %arg4: memref<1x32xf32, #tpu.memory_space<vmem>>, %arg5: memref<1x32xf32, #tpu.memory_space<vmem>>, %arg6: memref<1x32xf32, #tpu.memory_space<vmem>>, %arg7: memref<1x32x64xf32, #tpu.memory_space<vmem>>, %arg8: memref<1x1x64xf32, #tpu.memory_space<vmem>>, %arg9: memref<1x32x64xf32, #tpu.memory_space<vmem>>, %arg10: memref<1x2x32xf32, #tpu.memory_space<vmem>>, %arg11: memref<1x2x32xf32, #tpu.memory_space<vmem>>, %arg12: memref<32x128xf32, #tpu.memory_space<vmem>>, %arg13: memref<1x128xf32, #tpu.memory_space<vmem>>, %arg14: memref<32x128xf32, #tpu.memory_space<vmem>>, %arg15: memref<1x128xf32, #tpu.memory_space<vmem>>, %arg16: memref<1x8x128xf32, #tpu.memory_space<vmem>>) attributes {dimension_semantics = [#tpu.dimension_semantics<parallel>], iteration_bounds = array<i64: 2>, scalar_prefetch = 0 : i64, scratch_operands = 0 : i64, tpu.core_type = #tpu.core_type<tc>, window_params = [{transform_indices = @transform_0, window_bounds = array<i64: 1, 8, 64>}, {transform_indices = @transform_1, window_bounds = array<i64: 1, 8, 4>}, {pipeline_mode = #tpu.pipeline_mode<synchronous>, transform_indices = @transform_2, window_bounds = array<i64: 64, 32>}, {pipeline_mode = #tpu.pipeline_mode<synchronous>, transform_indices = @transform_3, window_bounds = array<i64: 1, 32>}, {pipeline_mode = #tpu.pipeline_mode<synchronous>, transform_indices = @transform_4, window_bounds = array<i64: 1, 32>}, {pipeline_mode = #tpu.pipeline_mode<synchronous>, transform_indices = @transform_5, window_bounds = array<i64: 1, 32>}, {pipeline_mode = #tpu.pipeline_mode<synchronous>, transform_indices = @transform_6, window_bounds = array<i64: 1, 32, 64>}, {pipeline_mode = #tpu.pipeline_mode<synchronous>, transform_indices = @transform_7, window_bounds = array<i64: 1, 1, 64>}, {pipeline_mode = #tpu.pipeline_mode<synchronous>, transform_indices = @transform_8, window_bounds = array<i64: 1, 32, 64>}, {pipeline_mode = #tpu.pipeline_mode<synchronous>, transform_indices = @transform_9, window_bounds = array<i64: 1, 2, 32>}, {pipeline_mode = #tpu.pipeline_mode<synchronous>, transform_indices = @transform_10, window_bounds = array<i64: 1, 2, 32>}, {pipeline_mode = #tpu.pipeline_mode<synchronous>, transform_indices = @transform_11, window_bounds = array<i64: 32, 128>}, {pipeline_mode = #tpu.pipeline_mode<synchronous>, transform_indices = @transform_12, window_bounds = array<i64: 1, 128>}, {pipeline_mode = #tpu.pipeline_mode<synchronous>, transform_indices = @transform_13, window_bounds = array<i64: 32, 128>}, {pipeline_mode = #tpu.pipeline_mode<synchronous>, transform_indices = @transform_14, window_bounds = array<i64: 1, 128>}, {transform_indices = @transform_15, window_bounds = array<i64: 1, 8, 128>}]} {
    %c0 = arith.constant 0 : index
    %c0_0 = arith.constant 0 : index
    %c0_1 = arith.constant 0 : index
    %0 = vector.load %arg1[%c0, %c0_0, %c0_1] : memref<1x8x64xf32, #tpu.memory_space<vmem>>, vector<1x8x64xf32>
    %1 = vector.shape_cast %0 : vector<1x8x64xf32> to vector<8x64xf32>
    %c0_2 = arith.constant 0 : index
    %c0_3 = arith.constant 0 : index
    %2 = vector.load %arg3[%c0_2, %c0_3] : memref<64x32xf32, #tpu.memory_space<vmem>>, vector<64x32xf32>
    %cst = arith.constant dense<0.000000e+00> : vector<8x32xf32>
    %3 = tpu.matmul %1, %2, %cst {dimension_numbers = #tpu.dot_dimension_numbers<[1], [0], [0], [1], [0, 0, 1, 1], [], []>} : vector<8x64xf32>, vector<64x32xf32>, vector<8x32xf32> -> vector<8x32xf32>
    %c0_4 = arith.constant 0 : index
    %c0_5 = arith.constant 0 : index
    %4 = vector.load %arg4[%c0_4, %c0_5] : memref<1x32xf32, #tpu.memory_space<vmem>>, vector<1x32xf32>
    %5 = vector.broadcast %4 : vector<1x32xf32> to vector<8x32xf32>
    %6 = arith.addf %3, %5 : vector<8x32xf32>
    %cst_6 = arith.constant dense<0.000000e+00> : vector<8xf32>
    %7 = vector.multi_reduction <add>, %6, %cst_6 [1] : vector<8x32xf32> to vector<8xf32>
    %8 = vector.shape_cast %7 : vector<8xf32> to vector<8x1xf32>
    %cst_7 = arith.constant 3.200000e+01 : f32
    %9 = vector.broadcast %cst_7 : f32 to vector<8x1xf32>
    %10 = arith.divf %8, %9 : vector<8x1xf32>
    %11 = vector.broadcast %10 : vector<8x1xf32> to vector<8x32xf32>
    %12 = arith.subf %6, %11 : vector<8x32xf32>
    %13 = arith.mulf %12, %12 : vector<8x32xf32>
    %cst_8 = arith.constant dense<0.000000e+00> : vector<8xf32>
    %14 = vector.multi_reduction <add>, %13, %cst_8 [1] : vector<8x32xf32> to vector<8xf32>
    %15 = vector.shape_cast %14 : vector<8xf32> to vector<8x1xf32>
    %cst_9 = arith.constant 3.200000e+01 : f32
    %16 = vector.broadcast %cst_9 : f32 to vector<8x1xf32>
    %17 = arith.divf %15, %16 : vector<8x1xf32>
    %18 = vector.broadcast %10 : vector<8x1xf32> to vector<8x32xf32>
    %19 = arith.subf %6, %18 : vector<8x32xf32>
    %cst_10 = arith.constant 9.99999974E-6 : f32
    %20 = vector.broadcast %cst_10 : f32 to vector<8x1xf32>
    %21 = arith.addf %17, %20 : vector<8x1xf32>
    %22 = math.rsqrt %21 : vector<8x1xf32>
    %23 = vector.broadcast %22 : vector<8x1xf32> to vector<8x32xf32>
    %24 = arith.mulf %19, %23 : vector<8x32xf32>
    %c0_11 = arith.constant 0 : index
    %c0_12 = arith.constant 0 : index
    %25 = vector.load %arg5[%c0_11, %c0_12] : memref<1x32xf32, #tpu.memory_space<vmem>>, vector<1x32xf32>
    %26 = vector.broadcast %25 : vector<1x32xf32> to vector<8x32xf32>
    %27 = arith.mulf %24, %26 : vector<8x32xf32>
    %c0_13 = arith.constant 0 : index
    %c0_14 = arith.constant 0 : index
    %28 = vector.load %arg6[%c0_13, %c0_14] : memref<1x32xf32, #tpu.memory_space<vmem>>, vector<1x32xf32>
    %29 = vector.broadcast %28 : vector<1x32xf32> to vector<8x32xf32>
    %30 = arith.addf %27, %29 : vector<8x32xf32>
    %cst_15 = arith.constant 0.000000e+00 : f32
    %31 = vector.broadcast %cst_15 : f32 to vector<8x32xf32>
    %32 = arith.maximumf %30, %31 : vector<8x32xf32>
    %c0_16 = arith.constant 0 : index
    %c0_17 = arith.constant 0 : index
    %c0_18 = arith.constant 0 : index
    %33 = vector.load %arg2[%c0_16, %c0_17, %c0_18] : memref<1x8x4xf32, #tpu.memory_space<vmem>>, vector<1x8x4xf32>
    %34 = vector.shape_cast %33 : vector<1x8x4xf32> to vector<8x4xf32>
    %35 = vector.extract_strided_slice %34 {offsets = [0, 0], sizes = [8, 1], strides = [1, 1]} : vector<8x4xf32> to vector<8x1xf32>
    %36 = vector.extract_strided_slice %34 {offsets = [0, 2], sizes = [8, 1], strides = [1, 1]} : vector<8x4xf32> to vector<8x1xf32>
    %37 = arith.addf %35, %36 : vector<8x1xf32>
    %cst_19 = arith.constant 5.000000e-01 : f32
    %38 = vector.broadcast %cst_19 : f32 to vector<8x1xf32>
    %39 = arith.mulf %37, %38 : vector<8x1xf32>
    %40 = vector.extract_strided_slice %34 {offsets = [0, 1], sizes = [8, 1], strides = [1, 1]} : vector<8x4xf32> to vector<8x1xf32>
    %41 = vector.extract_strided_slice %34 {offsets = [0, 3], sizes = [8, 1], strides = [1, 1]} : vector<8x4xf32> to vector<8x1xf32>
    %42 = arith.addf %40, %41 : vector<8x1xf32>
    %cst_20 = arith.constant 5.000000e-01 : f32
    %43 = vector.broadcast %cst_20 : f32 to vector<8x1xf32>
    %44 = arith.mulf %42, %43 : vector<8x1xf32>
    %45 = arith.mulf %39, %39 : vector<8x1xf32>
    %46 = arith.mulf %44, %44 : vector<8x1xf32>
    %47 = arith.addf %45, %46 : vector<8x1xf32>
    %cst_21 = arith.constant 1.000000e+00 : f32
    %48 = vector.broadcast %cst_21 : f32 to vector<8x1xf32>
    %49 = tpu.concatenate %39, %44, %47, %48 in 1 : vector<8x1xf32>, vector<8x1xf32>, vector<8x1xf32>, vector<8x1xf32> -> vector<8x4xf32>
    %cst_22 = arith.constant -2.000000e+00 : f32
    %50 = vector.broadcast %cst_22 : f32 to vector<8x1xf32>
    %51 = arith.mulf %50, %39 : vector<8x1xf32>
    %cst_23 = arith.constant -2.000000e+00 : f32
    %52 = vector.broadcast %cst_23 : f32 to vector<8x1xf32>
    %53 = arith.mulf %52, %44 : vector<8x1xf32>
    %54 = tpu.concatenate %51, %53, %48, %47 in 1 : vector<8x1xf32>, vector<8x1xf32>, vector<8x1xf32>, vector<8x1xf32> -> vector<8x4xf32>
    %cst_24 = arith.constant dense<0.000000e+00> : vector<8x8xf32>
    %55 = tpu.matmul %49, %54, %cst_24 {dimension_numbers = #tpu.dot_dimension_numbers<[1], [1], [0], [0], [0, 0, 1, 0], [], []>} : vector<8x4xf32>, vector<8x4xf32>, vector<8x8xf32> -> vector<8x8xf32>
    %cst_25 = arith.constant 2.560000e+00 : f32
    %56 = vector.broadcast %cst_25 : f32 to vector<8x8xf32>
    %57 = arith.cmpf ogt, %55, %56 : vector<8x8xf32>
    %c0_26 = arith.constant 0 : index
    %c0_27 = arith.constant 0 : index
    %c0_28 = arith.constant 0 : index
    %58 = vector.load %arg7[%c0_26, %c0_27, %c0_28] : memref<1x32x64xf32, #tpu.memory_space<vmem>>, vector<1x32x64xf32>
    %59 = vector.shape_cast %58 : vector<1x32x64xf32> to vector<32x64xf32>
    %cst_29 = arith.constant dense<0.000000e+00> : vector<8x64xf32>
    %60 = tpu.matmul %32, %59, %cst_29 {dimension_numbers = #tpu.dot_dimension_numbers<[1], [0], [0], [1], [0, 0, 1, 1], [], []>} : vector<8x32xf32>, vector<32x64xf32>, vector<8x64xf32> -> vector<8x64xf32>
    %c0_30 = arith.constant 0 : index
    %c0_31 = arith.constant 0 : index
    %c0_32 = arith.constant 0 : index
    %61 = vector.load %arg8[%c0_30, %c0_31, %c0_32] : memref<1x1x64xf32, #tpu.memory_space<vmem>>, vector<1x1x64xf32>
    %62 = vector.shape_cast %61 : vector<1x1x64xf32> to vector<1x64xf32>
    %63 = vector.broadcast %62 : vector<1x64xf32> to vector<8x64xf32>
    %64 = arith.addf %60, %63 : vector<8x64xf32>
    %c0_33 = arith.constant 0 : index
    %c0_34 = arith.constant 0 : index
    %c0_35 = arith.constant 0 : index
    %65 = vector.load %arg9[%c0_33, %c0_34, %c0_35] : memref<1x32x64xf32, #tpu.memory_space<vmem>>, vector<1x32x64xf32>
    %66 = vector.shape_cast %65 : vector<1x32x64xf32> to vector<32x64xf32>
    %cst_36 = arith.constant dense<0.000000e+00> : vector<8x64xf32>
    %67 = tpu.matmul %32, %66, %cst_36 {dimension_numbers = #tpu.dot_dimension_numbers<[1], [0], [0], [1], [0, 0, 1, 1], [], []>} : vector<8x32xf32>, vector<32x64xf32>, vector<8x64xf32> -> vector<8x64xf32>
    %c0_37 = arith.constant 0 : index
    %c0_38 = arith.constant 0 : index
    %c0_39 = arith.constant 0 : index
    %68 = vector.load %arg10[%c0_37, %c0_38, %c0_39] : memref<1x2x32xf32, #tpu.memory_space<vmem>>, vector<1x2x32xf32>
    %69 = vector.shape_cast %68 : vector<1x2x32xf32> to vector<2x32xf32>
    %c0_40 = arith.constant 0 : index
    %c0_41 = arith.constant 0 : index
    %c0_42 = arith.constant 0 : index
    %70 = vector.load %arg11[%c0_40, %c0_41, %c0_42] : memref<1x2x32xf32, #tpu.memory_space<vmem>>, vector<1x2x32xf32>
    %71 = vector.shape_cast %70 : vector<1x2x32xf32> to vector<2x32xf32>
    %cst_43 = arith.constant 0.000000e+00 : f32
    %72 = vector.broadcast %cst_43 : f32 to vector<8x32xf32>
    %73 = vector.extract_strided_slice %64 {offsets = [0, 0], sizes = [8, 16], strides = [1, 1]} : vector<8x64xf32> to vector<8x16xf32>
    %74 = vector.extract_strided_slice %64 {offsets = [0, 32], sizes = [8, 16], strides = [1, 1]} : vector<8x64xf32> to vector<8x16xf32>
    %cst_44 = arith.constant dense<0.000000e+00> : vector<8x8xf32>
    %75 = tpu.matmul %73, %74, %cst_44 {dimension_numbers = #tpu.dot_dimension_numbers<[1], [1], [0], [0], [0, 0, 1, 0], [], []>} : vector<8x16xf32>, vector<8x16xf32>, vector<8x8xf32> -> vector<8x8xf32>
    %cst_45 = arith.constant 2.500000e-01 : f32
    %76 = vector.broadcast %cst_45 : f32 to vector<8x8xf32>
    %77 = arith.mulf %75, %76 : vector<8x8xf32>
    %cst_46 = arith.constant -1.000000e+09 : f32
    %78 = vector.broadcast %cst_46 : f32 to vector<8x8xf32>
    %79 = arith.select %57, %78, %77 : vector<8x8xi1>, vector<8x8xf32>
    %cst_47 = arith.constant dense<0xFF800000> : vector<8xf32>
    %80 = vector.multi_reduction <maximumf>, %79, %cst_47 [1] : vector<8x8xf32> to vector<8xf32>
    %81 = vector.shape_cast %80 : vector<8xf32> to vector<8x1xf32>
    %82 = vector.broadcast %81 : vector<8x1xf32> to vector<8x8xf32>
    %83 = arith.subf %79, %82 : vector<8x8xf32>
    %84 = math.exp %83 : vector<8x8xf32>
    %cst_48 = arith.constant dense<0.000000e+00> : vector<8xf32>
    %85 = vector.multi_reduction <add>, %84, %cst_48 [1] : vector<8x8xf32> to vector<8xf32>
    %86 = vector.shape_cast %85 : vector<8xf32> to vector<8x1xf32>
    %87 = tpu.reciprocal %86 {approx = true} : vector<8x1xf32> -> vector<8x1xf32>
    %88 = vector.broadcast %87 : vector<8x1xf32> to vector<8x8xf32>
    %89 = arith.mulf %84, %88 : vector<8x8xf32>
    %90 = vector.extract_strided_slice %67 {offsets = [0, 0], sizes = [8, 32], strides = [1, 1]} : vector<8x64xf32> to vector<8x32xf32>
    %cst_49 = arith.constant dense<0.000000e+00> : vector<8x32xf32>
    %91 = tpu.matmul %89, %90, %cst_49 {dimension_numbers = #tpu.dot_dimension_numbers<[1], [0], [0], [1], [0, 0, 1, 1], [], []>} : vector<8x8xf32>, vector<8x32xf32>, vector<8x32xf32> -> vector<8x32xf32>
    %cst_50 = arith.constant dense<0.000000e+00> : vector<8xf32>
    %92 = vector.multi_reduction <add>, %91, %cst_50 [1] : vector<8x32xf32> to vector<8xf32>
    %93 = vector.shape_cast %92 : vector<8xf32> to vector<8x1xf32>
    %cst_51 = arith.constant 3.200000e+01 : f32
    %94 = vector.broadcast %cst_51 : f32 to vector<8x1xf32>
    %95 = arith.divf %93, %94 : vector<8x1xf32>
    %96 = vector.broadcast %95 : vector<8x1xf32> to vector<8x32xf32>
    %97 = arith.subf %91, %96 : vector<8x32xf32>
    %98 = arith.mulf %97, %97 : vector<8x32xf32>
    %cst_52 = arith.constant dense<0.000000e+00> : vector<8xf32>
    %99 = vector.multi_reduction <add>, %98, %cst_52 [1] : vector<8x32xf32> to vector<8xf32>
    %100 = vector.shape_cast %99 : vector<8xf32> to vector<8x1xf32>
    %cst_53 = arith.constant 3.200000e+01 : f32
    %101 = vector.broadcast %cst_53 : f32 to vector<8x1xf32>
    %102 = arith.divf %100, %101 : vector<8x1xf32>
    %103 = vector.broadcast %95 : vector<8x1xf32> to vector<8x32xf32>
    %104 = arith.subf %91, %103 : vector<8x32xf32>
    %cst_54 = arith.constant 9.99999974E-6 : f32
    %105 = vector.broadcast %cst_54 : f32 to vector<8x1xf32>
    %106 = arith.addf %102, %105 : vector<8x1xf32>
    %107 = math.rsqrt %106 : vector<8x1xf32>
    %108 = vector.broadcast %107 : vector<8x1xf32> to vector<8x32xf32>
    %109 = arith.mulf %104, %108 : vector<8x32xf32>
    %110 = vector.extract_strided_slice %69 {offsets = [0, 0], sizes = [1, 32], strides = [1, 1]} : vector<2x32xf32> to vector<1x32xf32>
    %111 = vector.broadcast %110 : vector<1x32xf32> to vector<8x32xf32>
    %112 = arith.mulf %109, %111 : vector<8x32xf32>
    %113 = vector.extract_strided_slice %71 {offsets = [0, 0], sizes = [1, 32], strides = [1, 1]} : vector<2x32xf32> to vector<1x32xf32>
    %114 = vector.broadcast %113 : vector<1x32xf32> to vector<8x32xf32>
    %115 = arith.addf %112, %114 : vector<8x32xf32>
    %cst_55 = arith.constant 0.000000e+00 : f32
    %116 = vector.broadcast %cst_55 : f32 to vector<8x32xf32>
    %117 = arith.maximumf %115, %116 : vector<8x32xf32>
    %118 = arith.addf %72, %117 : vector<8x32xf32>
    %119 = vector.extract_strided_slice %64 {offsets = [0, 16], sizes = [8, 16], strides = [1, 1]} : vector<8x64xf32> to vector<8x16xf32>
    %120 = vector.extract_strided_slice %64 {offsets = [0, 48], sizes = [8, 16], strides = [1, 1]} : vector<8x64xf32> to vector<8x16xf32>
    %cst_56 = arith.constant dense<0.000000e+00> : vector<8x8xf32>
    %121 = tpu.matmul %119, %120, %cst_56 {dimension_numbers = #tpu.dot_dimension_numbers<[1], [1], [0], [0], [0, 0, 1, 0], [], []>} : vector<8x16xf32>, vector<8x16xf32>, vector<8x8xf32> -> vector<8x8xf32>
    %cst_57 = arith.constant 2.500000e-01 : f32
    %122 = vector.broadcast %cst_57 : f32 to vector<8x8xf32>
    %123 = arith.mulf %121, %122 : vector<8x8xf32>
    %cst_58 = arith.constant -1.000000e+09 : f32
    %124 = vector.broadcast %cst_58 : f32 to vector<8x8xf32>
    %125 = arith.select %57, %124, %123 : vector<8x8xi1>, vector<8x8xf32>
    %cst_59 = arith.constant dense<0xFF800000> : vector<8xf32>
    %126 = vector.multi_reduction <maximumf>, %125, %cst_59 [1] : vector<8x8xf32> to vector<8xf32>
    %127 = vector.shape_cast %126 : vector<8xf32> to vector<8x1xf32>
    %128 = vector.broadcast %127 : vector<8x1xf32> to vector<8x8xf32>
    %129 = arith.subf %125, %128 : vector<8x8xf32>
    %130 = math.exp %129 : vector<8x8xf32>
    %cst_60 = arith.constant dense<0.000000e+00> : vector<8xf32>
    %131 = vector.multi_reduction <add>, %130, %cst_60 [1] : vector<8x8xf32> to vector<8xf32>
    %132 = vector.shape_cast %131 : vector<8xf32> to vector<8x1xf32>
    %133 = tpu.reciprocal %132 {approx = true} : vector<8x1xf32> -> vector<8x1xf32>
    %134 = vector.broadcast %133 : vector<8x1xf32> to vector<8x8xf32>
    %135 = arith.mulf %130, %134 : vector<8x8xf32>
    %136 = vector.extract_strided_slice %67 {offsets = [0, 32], sizes = [8, 32], strides = [1, 1]} : vector<8x64xf32> to vector<8x32xf32>
    %cst_61 = arith.constant dense<0.000000e+00> : vector<8x32xf32>
    %137 = tpu.matmul %135, %136, %cst_61 {dimension_numbers = #tpu.dot_dimension_numbers<[1], [0], [0], [1], [0, 0, 1, 1], [], []>} : vector<8x8xf32>, vector<8x32xf32>, vector<8x32xf32> -> vector<8x32xf32>
    %cst_62 = arith.constant dense<0.000000e+00> : vector<8xf32>
    %138 = vector.multi_reduction <add>, %137, %cst_62 [1] : vector<8x32xf32> to vector<8xf32>
    %139 = vector.shape_cast %138 : vector<8xf32> to vector<8x1xf32>
    %cst_63 = arith.constant 3.200000e+01 : f32
    %140 = vector.broadcast %cst_63 : f32 to vector<8x1xf32>
    %141 = arith.divf %139, %140 : vector<8x1xf32>
    %142 = vector.broadcast %141 : vector<8x1xf32> to vector<8x32xf32>
    %143 = arith.subf %137, %142 : vector<8x32xf32>
    %144 = arith.mulf %143, %143 : vector<8x32xf32>
    %cst_64 = arith.constant dense<0.000000e+00> : vector<8xf32>
    %145 = vector.multi_reduction <add>, %144, %cst_64 [1] : vector<8x32xf32> to vector<8xf32>
    %146 = vector.shape_cast %145 : vector<8xf32> to vector<8x1xf32>
    %cst_65 = arith.constant 3.200000e+01 : f32
    %147 = vector.broadcast %cst_65 : f32 to vector<8x1xf32>
    %148 = arith.divf %146, %147 : vector<8x1xf32>
    %149 = vector.broadcast %141 : vector<8x1xf32> to vector<8x32xf32>
    %150 = arith.subf %137, %149 : vector<8x32xf32>
    %cst_66 = arith.constant 9.99999974E-6 : f32
    %151 = vector.broadcast %cst_66 : f32 to vector<8x1xf32>
    %152 = arith.addf %148, %151 : vector<8x1xf32>
    %153 = math.rsqrt %152 : vector<8x1xf32>
    %154 = vector.broadcast %153 : vector<8x1xf32> to vector<8x32xf32>
    %155 = arith.mulf %150, %154 : vector<8x32xf32>
    %156 = vector.extract_strided_slice %69 {offsets = [1, 0], sizes = [1, 32], strides = [1, 1]} : vector<2x32xf32> to vector<1x32xf32>
    %157 = vector.broadcast %156 : vector<1x32xf32> to vector<8x32xf32>
    %158 = arith.mulf %155, %157 : vector<8x32xf32>
    %159 = vector.extract_strided_slice %71 {offsets = [1, 0], sizes = [1, 32], strides = [1, 1]} : vector<2x32xf32> to vector<1x32xf32>
    %160 = vector.broadcast %159 : vector<1x32xf32> to vector<8x32xf32>
    %161 = arith.addf %158, %160 : vector<8x32xf32>
    %cst_67 = arith.constant 0.000000e+00 : f32
    %162 = vector.broadcast %cst_67 : f32 to vector<8x32xf32>
    %163 = arith.maximumf %161, %162 : vector<8x32xf32>
    %164 = arith.addf %118, %163 : vector<8x32xf32>
    %165 = arith.addf %164, %32 : vector<8x32xf32>
    %c0_68 = arith.constant 0 : index
    %c0_69 = arith.constant 0 : index
    %166 = vector.load %arg12[%c0_68, %c0_69] : memref<32x128xf32, #tpu.memory_space<vmem>>, vector<32x128xf32>
    %cst_70 = arith.constant dense<0.000000e+00> : vector<8x128xf32>
    %167 = tpu.matmul %165, %166, %cst_70 {dimension_numbers = #tpu.dot_dimension_numbers<[1], [0], [0], [1], [0, 0, 1, 1], [], []>} : vector<8x32xf32>, vector<32x128xf32>, vector<8x128xf32> -> vector<8x128xf32>
    %c0_71 = arith.constant 0 : index
    %c0_72 = arith.constant 0 : index
    %168 = vector.load %arg13[%c0_71, %c0_72] : memref<1x128xf32, #tpu.memory_space<vmem>>, vector<1x128xf32>
    %169 = vector.broadcast %168 : vector<1x128xf32> to vector<8x128xf32>
    %170 = arith.addf %167, %169 : vector<8x128xf32>
    %171 = vector.extract_strided_slice %170 {offsets = [0, 0], sizes = [4, 128], strides = [1, 1]} : vector<8x128xf32> to vector<4x128xf32>
    %172 = vector.extract_strided_slice %170 {offsets = [4, 0], sizes = [4, 128], strides = [1, 1]} : vector<8x128xf32> to vector<4x128xf32>
    %173 = arith.addf %171, %172 : vector<4x128xf32>
    %cst_73 = arith.constant 5.000000e-01 : f32
    %174 = vector.broadcast %cst_73 : f32 to vector<4x128xf32>
    %175 = arith.mulf %173, %174 : vector<4x128xf32>
    %176 = vector.extract_strided_slice %165 {offsets = [0, 0], sizes = [1, 32], strides = [1, 1]} : vector<8x32xf32> to vector<1x32xf32>
    %177 = vector.extract_strided_slice %165 {offsets = [1, 0], sizes = [1, 32], strides = [1, 1]} : vector<8x32xf32> to vector<1x32xf32>
    %178 = arith.maximumf %176, %177 : vector<1x32xf32>
    %179 = vector.extract_strided_slice %165 {offsets = [2, 0], sizes = [1, 32], strides = [1, 1]} : vector<8x32xf32> to vector<1x32xf32>
    %180 = arith.maximumf %178, %179 : vector<1x32xf32>
    %181 = vector.extract_strided_slice %165 {offsets = [3, 0], sizes = [1, 32], strides = [1, 1]} : vector<8x32xf32> to vector<1x32xf32>
    %182 = arith.maximumf %180, %181 : vector<1x32xf32>
    %183 = vector.extract_strided_slice %165 {offsets = [4, 0], sizes = [1, 32], strides = [1, 1]} : vector<8x32xf32> to vector<1x32xf32>
    %184 = vector.extract_strided_slice %165 {offsets = [5, 0], sizes = [1, 32], strides = [1, 1]} : vector<8x32xf32> to vector<1x32xf32>
    %185 = arith.maximumf %183, %184 : vector<1x32xf32>
    %186 = vector.extract_strided_slice %165 {offsets = [6, 0], sizes = [1, 32], strides = [1, 1]} : vector<8x32xf32> to vector<1x32xf32>
    %187 = arith.maximumf %185, %186 : vector<1x32xf32>
    %188 = vector.extract_strided_slice %165 {offsets = [7, 0], sizes = [1, 32], strides = [1, 1]} : vector<8x32xf32> to vector<1x32xf32>
    %189 = arith.maximumf %187, %188 : vector<1x32xf32>
    %190 = tpu.concatenate %182, %189 in 0 : vector<1x32xf32>, vector<1x32xf32> -> vector<2x32xf32>
    %c0_74 = arith.constant 0 : index
    %c0_75 = arith.constant 0 : index
    %191 = vector.load %arg14[%c0_74, %c0_75] : memref<32x128xf32, #tpu.memory_space<vmem>>, vector<32x128xf32>
    %cst_76 = arith.constant dense<0.000000e+00> : vector<2x128xf32>
    %192 = tpu.matmul %190, %191, %cst_76 {dimension_numbers = #tpu.dot_dimension_numbers<[1], [0], [0], [1], [0, 0, 1, 1], [], []>} : vector<2x32xf32>, vector<32x128xf32>, vector<2x128xf32> -> vector<2x128xf32>
    %c0_77 = arith.constant 0 : index
    %c0_78 = arith.constant 0 : index
    %193 = vector.load %arg15[%c0_77, %c0_78] : memref<1x128xf32, #tpu.memory_space<vmem>>, vector<1x128xf32>
    %194 = vector.broadcast %193 : vector<1x128xf32> to vector<2x128xf32>
    %195 = arith.addf %192, %194 : vector<2x128xf32>
    %196 = vector.extract_strided_slice %195 {offsets = [0, 0], sizes = [1, 128], strides = [1, 1]} : vector<2x128xf32> to vector<1x128xf32>
    %197 = vector.extract_strided_slice %195 {offsets = [1, 0], sizes = [1, 128], strides = [1, 1]} : vector<2x128xf32> to vector<1x128xf32>
    %198 = arith.addf %196, %197 : vector<1x128xf32>
    %cst_79 = arith.constant 5.000000e-01 : f32
    %199 = vector.broadcast %cst_79 : f32 to vector<1x128xf32>
    %200 = arith.mulf %198, %199 : vector<1x128xf32>
    %cst_80 = arith.constant 0.000000e+00 : f32
    %201 = vector.broadcast %cst_80 : f32 to vector<3x128xf32>
    %202 = tpu.concatenate %175, %200, %201 in 0 : vector<4x128xf32>, vector<1x128xf32>, vector<3x128xf32> -> vector<8x128xf32>
    %c0_81 = arith.constant 0 : index
    %c0_82 = arith.constant 0 : index
    %c0_83 = arith.constant 0 : index
    %203 = vector.load %arg16[%c0_81, %c0_82, %c0_83] : memref<1x8x128xf32, #tpu.memory_space<vmem>>, vector<1x8x128xf32>
    %204 = vector.shape_cast %203 : vector<1x8x128xf32> to vector<8x128xf32>
    %205 = vector.shape_cast %202 : vector<8x128xf32> to vector<1x8x128xf32>
    tpu.vector_store %arg16[%c0_81, %c0_82, %c0_83], %205 {strides = array<i32>} : memref<1x8x128xf32, #tpu.memory_space<vmem>>, vector<1x8x128xf32>,
    return
  }
  func.func @transform_0(%arg0: i32) -> (i32, i32, i32) {
    %c0_i32 = arith.constant 0 : i32
    %c0_i32_0 = arith.constant 0 : i32
    %c0_i32_1 = arith.constant 0 : i32
    return %arg0, %c0_i32, %c0_i32_0 : i32, i32, i32
  }
  func.func @transform_1(%arg0: i32) -> (i32, i32, i32) {
    %c0_i32 = arith.constant 0 : i32
    %c0_i32_0 = arith.constant 0 : i32
    %c0_i32_1 = arith.constant 0 : i32
    return %arg0, %c0_i32, %c0_i32_0 : i32, i32, i32
  }
  func.func @transform_2(%arg0: i32) -> (i32, i32) {
    %c0_i32 = arith.constant 0 : i32
    %c0_i32_0 = arith.constant 0 : i32
    %c0_i32_1 = arith.constant 0 : i32
    return %c0_i32, %c0_i32_0 : i32, i32
  }
  func.func @transform_3(%arg0: i32) -> (i32, i32) {
    %c0_i32 = arith.constant 0 : i32
    %c0_i32_0 = arith.constant 0 : i32
    %c0_i32_1 = arith.constant 0 : i32
    return %c0_i32, %c0_i32_0 : i32, i32
  }
  func.func @transform_4(%arg0: i32) -> (i32, i32) {
    %c0_i32 = arith.constant 0 : i32
    %c0_i32_0 = arith.constant 0 : i32
    %c0_i32_1 = arith.constant 0 : i32
    return %c0_i32, %c0_i32_0 : i32, i32
  }
  func.func @transform_5(%arg0: i32) -> (i32, i32) {
    %c0_i32 = arith.constant 0 : i32
    %c0_i32_0 = arith.constant 0 : i32
    %c0_i32_1 = arith.constant 0 : i32
    return %c0_i32, %c0_i32_0 : i32, i32
  }
  func.func @transform_6(%arg0: i32) -> (i32, i32, i32) {
    %c0_i32 = arith.constant 0 : i32
    %c0_i32_0 = arith.constant 0 : i32
    %c0_i32_1 = arith.constant 0 : i32
    %c0_i32_2 = arith.constant 0 : i32
    return %c0_i32, %c0_i32_0, %c0_i32_1 : i32, i32, i32
  }
  func.func @transform_7(%arg0: i32) -> (i32, i32, i32) {
    %c0_i32 = arith.constant 0 : i32
    %c0_i32_0 = arith.constant 0 : i32
    %c0_i32_1 = arith.constant 0 : i32
    %c0_i32_2 = arith.constant 0 : i32
    return %c0_i32, %c0_i32_0, %c0_i32_1 : i32, i32, i32
  }
  func.func @transform_8(%arg0: i32) -> (i32, i32, i32) {
    %c0_i32 = arith.constant 0 : i32
    %c0_i32_0 = arith.constant 0 : i32
    %c0_i32_1 = arith.constant 0 : i32
    %c0_i32_2 = arith.constant 0 : i32
    return %c0_i32, %c0_i32_0, %c0_i32_1 : i32, i32, i32
  }
  func.func @transform_9(%arg0: i32) -> (i32, i32, i32) {
    %c0_i32 = arith.constant 0 : i32
    %c0_i32_0 = arith.constant 0 : i32
    %c0_i32_1 = arith.constant 0 : i32
    %c0_i32_2 = arith.constant 0 : i32
    return %c0_i32, %c0_i32_0, %c0_i32_1 : i32, i32, i32
  }
  func.func @transform_10(%arg0: i32) -> (i32, i32, i32) {
    %c0_i32 = arith.constant 0 : i32
    %c0_i32_0 = arith.constant 0 : i32
    %c0_i32_1 = arith.constant 0 : i32
    %c0_i32_2 = arith.constant 0 : i32
    return %c0_i32, %c0_i32_0, %c0_i32_1 : i32, i32, i32
  }
  func.func @transform_11(%arg0: i32) -> (i32, i32) {
    %c0_i32 = arith.constant 0 : i32
    %c0_i32_0 = arith.constant 0 : i32
    %c0_i32_1 = arith.constant 0 : i32
    return %c0_i32, %c0_i32_0 : i32, i32
  }
  func.func @transform_12(%arg0: i32) -> (i32, i32) {
    %c0_i32 = arith.constant 0 : i32
    %c0_i32_0 = arith.constant 0 : i32
    %c0_i32_1 = arith.constant 0 : i32
    return %c0_i32, %c0_i32_0 : i32, i32
  }
  func.func @transform_13(%arg0: i32) -> (i32, i32) {
    %c0_i32 = arith.constant 0 : i32
    %c0_i32_0 = arith.constant 0 : i32
    %c0_i32_1 = arith.constant 0 : i32
    return %c0_i32, %c0_i32_0 : i32, i32
  }
  func.func @transform_14(%arg0: i32) -> (i32, i32) {
    %c0_i32 = arith.constant 0 : i32
    %c0_i32_0 = arith.constant 0 : i32
    %c0_i32_1 = arith.constant 0 : i32
    return %c0_i32, %c0_i32_0 : i32, i32
  }
  func.func @transform_15(%arg0: i32) -> (i32, i32, i32) {
    %c0_i32 = arith.constant 0 : i32
    %c0_i32_0 = arith.constant 0 : i32
    %c0_i32_1 = arith.constant 0 : i32
    return %arg0, %c0_i32, %c0_i32_0 : i32, i32, i32
  }
}

</mosaic_0001>

<llo_original>
// kernel: gcnnet_collective_forward.1
$region0: #{gcnnet_collective_forward.1}
  #allocation0 [shape = 'u32[]', space=smem, size = 0x4, offset = 0x4, fixed_abs, tag = 'smem constant byte address 0x4 - core index']
  #allocation1 [shape = 'u32[144,128]{1,0:T(1,128)}', space=vmem, size = 0x12000, scoped, tag = 'internal scratch']
  %s0 = inlined_call_operand.hbm [shape: f32[2,8,64], index: 0, kind: input, shape index: {}]
  %s1 = inlined_call_operand.hbm [shape: f32[2,8,4], index: 1, kind: input, shape index: {}]
  %s2 = inlined_call_operand.vmem [shape: f32[64,32], index: 2, kind: input, shape index: {}]
  %s3 = inlined_call_operand.vmem [shape: f32[1,32], index: 3, kind: input, shape index: {}]
  %s4 = inlined_call_operand.vmem [shape: f32[1,32], index: 4, kind: input, shape index: {}]
  %s5 = inlined_call_operand.vmem [shape: f32[1,32], index: 5, kind: input, shape index: {}]
  %s6 = inlined_call_operand.vmem [shape: f32[1,32,64], index: 6, kind: input, shape index: {}]
  %s7 = inlined_call_operand.vmem [shape: f32[1,1,64], index: 7, kind: input, shape index: {}]
  %s8 = inlined_call_operand.vmem [shape: f32[1,32,64], index: 8, kind: input, shape index: {}]
  %s9 = inlined_call_operand.vmem [shape: f32[1,2,32], index: 9, kind: input, shape index: {}]
  %s10 = inlined_call_operand.vmem [shape: f32[1,2,32], index: 10, kind: input, shape index: {}]
  %s11 = inlined_call_operand.vmem [shape: f32[32,128], index: 11, kind: input, shape index: {}]
  %s12 = inlined_call_operand.hbm [shape: f32[1,128], index: 12, kind: input, shape index: {}]
  %s13 = inlined_call_operand.hbm [shape: f32[32,128], index: 13, kind: input, shape index: {}]
  %s14 = inlined_call_operand.vmem [shape: f32[1,128], index: 14, kind: input, shape index: {}]
  %s15 = inlined_call_operand.vmem [shape: f32[2,8,128], index: 15, kind: output, shape index: {}]
  %s16 = sld [smem:[#allocation0]]
  $region109: #{gcnnet_collective_forward.1} parent=0
    _
  %s18 = ssub.s32 1, %s16
  %s19 = scalar_select 0, %s18, %s16
  $region1: #{gcnnet_collective_forward.1} parent=0
    #allocation2 [shape = 'u8[8192]{0}', space=vmem, size = 0x2000, scoped, tag = 'input window, operand 0']
    #allocation3 [shape = 's32[2]{0}', space=sflag, size = 0x8, scoped, tag = 'scoped memory for gcnnet_collective_forward.1']
    #allocation4 [shape = 'u8[8192]{0}', space=vmem, size = 0x2000, scoped, tag = 'input window, operand 1']
    #allocation5 [shape = 's32[2]{0}', space=sflag, size = 0x8, scoped, tag = 'scoped memory for gcnnet_collective_forward.1']
    #allocation6 [shape = 'u8[512]{0}', space=vmem, size = 0x400, scoped, tag = 'input window, operand 12, single buffered']
    #allocation7 [shape = 'u8[16384]{0}', space=vmem, size = 0x4000, scoped, tag = 'input window, operand 13, single buffered']
    #allocation8 [shape = 's32[1]{0}', space=sflag, size = 0x4, scoped, tag = 'scoped memory for gcnnet_collective_forward.1']
    %20 = vsyncpa [#allocation3], 0
    %s21 = scalar_lea.sflag [#allocation3], 1
    %22 = vsyncpa %s21, 0
    %23 = vsyncpa [#allocation5], 0
    %s24 = scalar_lea.sflag [#allocation5], 1
    %25 = vsyncpa %s24, 0
    %26 = vsyncpa [#allocation8], 0
    loop: start=0, step=1, limit=4
    $region2: #{gcnnet_collective_forward.1} parent=1 // loop_pre_header
      _
    $region3: #{gcnnet_collective_forward.1} parent=1 // loop_header
      %s28 = sphi 0, %s32
      %p29 = scmp.ge.s32.totalorder %s28, 4
      %s38 = sphi 0, %s40
      %s41 = sphi 0, %s38
      %s42 = sphi 0, %s41
      %s58 = sphi 0, %s42
      %s64 = sphi 0, %s66
      %s67 = sphi 0, %s64
      %s68 = sphi 0, %s67
      %s84 = sphi 0, %s68
      %s88 = sphi 0, %s88
      %s90 = sphi 0, %s88
      %s91 = sphi 0, %s90
      %s105 = sphi 0, %s91
      %s109 = sphi 0, %s109
      %s111 = sphi 0, %s109
      %s112 = sphi 0, %s111
      %s126 = sphi 0, %s112
      %s130 = sphi 0, %s130
      %s132 = sphi 0, %s130
      %s133 = sphi 0, %s132
      %s147 = sphi 0, %s133
      %s151 = sphi 0, %s151
      %s153 = sphi 0, %s151
      %s154 = sphi 0, %s153
      %s168 = sphi 0, %s154
      %s172 = sphi 0, %s172
      %s174 = sphi 0, %s172
      %s175 = sphi 0, %s174
      %s189 = sphi 0, %s175
      %s193 = sphi 0, %s193
      %s195 = sphi 0, %s193
      %s196 = sphi 0, %s195
      %s210 = sphi 0, %s196
      %s214 = sphi 0, %s214
      %s216 = sphi 0, %s214
      %s217 = sphi 0, %s216
      %s231 = sphi 0, %s217
      %s235 = sphi 0, %s235
      %s237 = sphi 0, %s235
      %s238 = sphi 0, %s237
      %s252 = sphi 0, %s238
      %s256 = sphi 0, %s256
      %s258 = sphi 0, %s256
      %s259 = sphi 0, %s258
      %s273 = sphi 0, %s259
      %s277 = sphi 0, %s277
      %s279 = sphi 0, %s277
      %s280 = sphi 0, %s279
      %s294 = sphi 0, %s280
      %s298 = sphi 0, %s298
      %s300 = sphi 0, %s298
      %s301 = sphi 0, %s300
      %s315 = sphi 0, %s301
      %s319 = sphi 0, %s319
      %s321 = sphi 0, %s319
      %s322 = sphi 0, %s321
      %s336 = sphi 0, %s322
      %s340 = sphi 0, %s340
      %s342 = sphi 0, %s340
      %s343 = sphi 0, %s342
      %s357 = sphi 0, %s343
      %s363 = sphi 0, %s365
      %s366 = sphi 0, %s363
      %s367 = sphi 0, %s366
      %s383 = sphi 0, %s367
    $region4: #{gcnnet_collective_forward.1} parent=1 // loop_header_branch
      %31 = sbr.rel (%p29) target = $region8
    $region5: #{gcnnet_collective_forward.1} parent=1 // loop_body
      %s33 = ssub.s32 %s28, 1
      %s34 = ssub.s32 %s28, 2
      %s35 = sadd.s32 %s28, 1
      %s36 = ssub.s32 %s28, %s35
      %p37 = scmp.eq.s32.totalorder %s36, 0
      %s39 = sadd.s32 %s38, 1
      %s40 = scalar_select %p37, %s38, %s39
      %p43 = pneg %p37
      %p44 = scmp.eq.s32.totalorder %s28, 1
      %p45 = por %p43, %p44
      %p46 = scmp.ne.s32.totalorder %s38, %s41
      %p47 = scmp.eq.s32.totalorder %s28, 0
      %p48 = por %p46, %p47
      %p49 = scmp.ne.s32.totalorder %s38, %s41
      %p50 = scmp.eq.s32.totalorder %s33, 1
      %p51 = por %p49, %p50
      %p52 = scmp.ne.s32.totalorder %s41, %s42
      %p53 = scmp.eq.s32.totalorder %s33, 0
      %p54 = por %p52, %p53
      %p55 = scmp.ne.s32.totalorder %s41, %s42
      %p56 = scmp.eq.s32.totalorder %s34, 1
      %p57 = por %p55, %p56
      %p59 = scmp.ne.s32.totalorder %s42, %s58
      %p60 = scmp.eq.s32.totalorder %s34, 0
      %p61 = por %p59, %p60
      %s62 = ssub.s32 %s28, %s35
      %p63 = scmp.eq.s32.totalorder %s62, 0
      %s65 = sadd.s32 %s64, 1
      %s66 = scalar_select %p63, %s64, %s65
      %p69 = pneg %p63
      %p70 = scmp.eq.s32.totalorder %s28, 1
      %p71 = por %p69, %p70
      %p72 = scmp.ne.s32.totalorder %s64, %s67
      %p73 = scmp.eq.s32.totalorder %s28, 0
      %p74 = por %p72, %p73
      %p75 = scmp.ne.s32.totalorder %s64, %s67
      %p76 = scmp.eq.s32.totalorder %s33, 1
      %p77 = por %p75, %p76
      %p78 = scmp.ne.s32.totalorder %s67, %s68
      %p79 = scmp.eq.s32.totalorder %s33, 0
      %p80 = por %p78, %p79
      %p81 = scmp.ne.s32.totalorder %s67, %s68
      %p82 = scmp.eq.s32.totalorder %s34, 1
      %p83 = por %p81, %p82
      %p85 = scmp.ne.s32.totalorder %s68, %s84
      %p86 = scmp.eq.s32.totalorder %s34, 0
      %p87 = por %p85, %p86
      %s89 = sadd.s32 %s88, 1
      %p92 = scmp.eq.s32.totalorder %s28, 1
      %p93 = scmp.ne.s32.totalorder %s88, %s90
      %p94 = scmp.eq.s32.totalorder %s28, 0
      %p95 = por %p93, %p94
      %p96 = scmp.ne.s32.totalorder %s88, %s90
      %p97 = scmp.eq.s32.totalorder %s33, 1
      %p98 = por %p96, %p97
      %p99 = scmp.ne.s32.totalorder %s90, %s91
      %p100 = scmp.eq.s32.totalorder %s33, 0
      %p101 = por %p99, %p100
      %p102 = scmp.ne.s32.totalorder %s90, %s91
      %p103 = scmp.eq.s32.totalorder %s34, 1
      %p104 = por %p102, %p103
      %p106 = scmp.ne.s32.totalorder %s91, %s105
      %p107 = scmp.eq.s32.totalorder %s34, 0
      %p108 = por %p106, %p107
      %s110 = sadd.s32 %s109, 1
      %p113 = scmp.eq.s32.totalorder %s28, 1
      %p114 = scmp.ne.s32.totalorder %s109, %s111
      %p115 = scmp.eq.s32.totalorder %s28, 0
      %p116 = por %p114, %p115
      %p117 = scmp.ne.s32.totalorder %s109, %s111
      %p118 = scmp.eq.s32.totalorder %s33, 1
      %p119 = por %p117, %p118
      %p120 = scmp.ne.s32.totalorder %s111, %s112
      %p121 = scmp.eq.s32.totalorder %s33, 0
      %p122 = por %p120, %p121
      %p123 = scmp.ne.s32.totalorder %s111, %s112
      %p124 = scmp.eq.s32.totalorder %s34, 1
      %p125 = por %p123, %p124
      %p127 = scmp.ne.s32.totalorder %s112, %s126
      %p128 = scmp.eq.s32.totalorder %s34, 0
      %p129 = por %p127, %p128
      %s131 = sadd.s32 %s130, 1
      %p134 = scmp.eq.s32.totalorder %s28, 1
      %p135 = scmp.ne.s32.totalorder %s130, %s132
      %p136 = scmp.eq.s32.totalorder %s28, 0
      %p137 = por %p135, %p136
      %p138 = scmp.ne.s32.totalorder %s130, %s132
      %p139 = scmp.eq.s32.totalorder %s33, 1
      %p140 = por %p138, %p139
      %p141 = scmp.ne.s32.totalorder %s132, %s133
      %p142 = scmp.eq.s32.totalorder %s33, 0
      %p143 = por %p141, %p142
      %p144 = scmp.ne.s32.totalorder %s132, %s133
      %p145 = scmp.eq.s32.totalorder %s34, 1
      %p146 = por %p144, %p145
      %p148 = scmp.ne.s32.totalorder %s133, %s147
      %p149 = scmp.eq.s32.totalorder %s34, 0
      %p150 = por %p148, %p149
      %s152 = sadd.s32 %s151, 1
      %p155 = scmp.eq.s32.totalorder %s28, 1
      %p156 = scmp.ne.s32.totalorder %s151, %s153
      %p157 = scmp.eq.s32.totalorder %s28, 0
      %p158 = por %p156, %p157
      %p159 = scmp.ne.s32.totalorder %s151, %s153
      %p160 = scmp.eq.s32.totalorder %s33, 1
      %p161 = por %p159, %p160
      %p162 = scmp.ne.s32.totalorder %s153, %s154
      %p163 = scmp.eq.s32.totalorder %s33, 0
      %p164 = por %p162, %p163
      %p165 = scmp.ne.s32.totalorder %s153, %s154
      %p166 = scmp.eq.s32.totalorder %s34, 1
      %p167 = por %p165, %p166
      %p169 = scmp.ne.s32.totalorder %s154, %s168
      %p170 = scmp.eq.s32.totalorder %s34, 0
      %p171 = por %p169, %p170
      %s173 = sadd.s32 %s172, 1
      %p176 = scmp.eq.s32.totalorder %s28, 1
      %p177 = scmp.ne.s32.totalorder %s172, %s174
      %p178 = scmp.eq.s32.totalorder %s28, 0
      %p179 = por %p177, %p178
      %p180 = scmp.ne.s32.totalorder %s172, %s174
      %p181 = scmp.eq.s32.totalorder %s33, 1
      %p182 = por %p180, %p181
      %p183 = scmp.ne.s32.totalorder %s174, %s175
      %p184 = scmp.eq.s32.totalorder %s33, 0
      %p185 = por %p183, %p184
      %p186 = scmp.ne.s32.totalorder %s174, %s175
      %p187 = scmp.eq.s32.totalorder %s34, 1
      %p188 = por %p186, %p187
      %p190 = scmp.ne.s32.totalorder %s175, %s189
      %p191 = scmp.eq.s32.totalorder %s34, 0
      %p192 = por %p190, %p191
      %s194 = sadd.s32 %s193, 1
      %p197 = scmp.eq.s32.totalorder %s28, 1
      %p198 = scmp.ne.s32.totalorder %s193, %s195
      %p199 = scmp.eq.s32.totalorder %s28, 0
      %p200 = por %p198, %p199
      %p201 = scmp.ne.s32.totalorder %s193, %s195
      %p202 = scmp.eq.s32.totalorder %s33, 1
      %p203 = por %p201, %p202
      %p204 = scmp.ne.s32.totalorder %s195, %s196
      %p205 = scmp.eq.s32.totalorder %s33, 0
      %p206 = por %p204, %p205
      %p207 = scmp.ne.s32.totalorder %s195, %s196
      %p208 = scmp.eq.s32.totalorder %s34, 1
      %p209 = por %p207, %p208
      %p211 = scmp.ne.s32.totalorder %s196, %s210
      %p212 = scmp.eq.s32.totalorder %s34, 0
      %p213 = por %p211, %p212
      %s215 = sadd.s32 %s214, 1
      %p218 = scmp.eq.s32.totalorder %s28, 1
      %p219 = scmp.ne.s32.totalorder %s214, %s216
      %p220 = scmp.eq.s32.totalorder %s28, 0
      %p221 = por %p219, %p220
      %p222 = scmp.ne.s32.totalorder %s214, %s216
      %p223 = scmp.eq.s32.totalorder %s33, 1
      %p224 = por %p222, %p223
      %p225 = scmp.ne.s32.totalorder %s216, %s217
      %p226 = scmp.eq.s32.totalorder %s33, 0
      %p227 = por %p225, %p226
      %p228 = scmp.ne.s32.totalorder %s216, %s217
      %p229 = scmp.eq.s32.totalorder %s34, 1
      %p230 = por %p228, %p229
      %p232 = scmp.ne.s32.totalorder %s217, %s231
      %p233 = scmp.eq.s32.totalorder %s34, 0
      %p234 = por %p232, %p233
      %s236 = sadd.s32 %s235, 1
      %p239 = scmp.eq.s32.totalorder %s28, 1
      %p240 = scmp.ne.s32.totalorder %s235, %s237
      %p241 = scmp.eq.s32.totalorder %s28, 0
      %p242 = por %p240, %p241
      %p243 = scmp.ne.s32.totalorder %s235, %s237
      %p244 = scmp.eq.s32.totalorder %s33, 1
      %p245 = por %p243, %p244
      %p246 = scmp.ne.s32.totalorder %s237, %s238
      %p247 = scmp.eq.s32.totalorder %s33, 0
      %p248 = por %p246, %p247
      %p249 = scmp.ne.s32.totalorder %s237, %s238
      %p250 = scmp.eq.s32.totalorder %s34, 1
      %p251 = por %p249, %p250
      %p253 = scmp.ne.s32.totalorder %s238, %s252
      %p254 = scmp.eq.s32.totalorder %s34, 0
      %p255 = por %p253, %p254
      %s257 = sadd.s32 %s256, 1
      %p260 = scmp.eq.s32.totalorder %s28, 1
      %p261 = scmp.ne.s32.totalorder %s256, %s258
      %p262 = scmp.eq.s32.totalorder %s28, 0
      %p263 = por %p261, %p262
      %p264 = scmp.ne.s32.totalorder %s256, %s258
      %p265 = scmp.eq.s32.totalorder %s33, 1
      %p266 = por %p264, %p265
      %p267 = scmp.ne.s32.totalorder %s258, %s259
      %p268 = scmp.eq.s32.totalorder %s33, 0
      %p269 = por %p267, %p268
      %p270 = scmp.ne.s32.totalorder %s258, %s259
      %p271 = scmp.eq.s32.totalorder %s34, 1
      %p272 = por %p270, %p271
      %p274 = scmp.ne.s32.totalorder %s259, %s273
      %p275 = scmp.eq.s32.totalorder %s34, 0
      %p276 = por %p274, %p275
      %s278 = sadd.s32 %s277, 1
      %p281 = scmp.eq.s32.totalorder %s28, 1
      %p282 = scmp.ne.s32.totalorder %s277, %s279
      %p283 = scmp.eq.s32.totalorder %s28, 0
      %p284 = por %p282, %p283
      %p285 = scmp.ne.s32.totalorder %s277, %s279
      %p286 = scmp.eq.s32.totalorder %s33, 1
      %p287 = por %p285, %p286
      %p288 = scmp.ne.s32.totalorder %s279, %s280
      %p289 = scmp.eq.s32.totalorder %s33, 0
      %p290 = por %p288, %p289
      %p291 = scmp.ne.s32.totalorder %s279, %s280
      %p292 = scmp.eq.s32.totalorder %s34, 1
      %p293 = por %p291, %p292
      %p295 = scmp.ne.s32.totalorder %s280, %s294
      %p296 = scmp.eq.s32.totalorder %s34, 0
      %p297 = por %p295, %p296
      %s299 = sadd.s32 %s298, 1
      %p302 = scmp.eq.s32.totalorder %s28, 1
      %p303 = scmp.ne.s32.totalorder %s298, %s300
      %p304 = scmp.eq.s32.totalorder %s28, 0
      %p305 = por %p303, %p304
      %p306 = scmp.ne.s32.totalorder %s298, %s300
      %p307 = scmp.eq.s32.totalorder %s33, 1
      %p308 = por %p306, %p307
      %p309 = scmp.ne.s32.totalorder %s300, %s301
      %p310 = scmp.eq.s32.totalorder %s33, 0
      %p311 = por %p309, %p310
      %p312 = scmp.ne.s32.totalorder %s300, %s301
      %p313 = scmp.eq.s32.totalorder %s34, 1
      %p314 = por %p312, %p313
      %p316 = scmp.ne.s32.totalorder %s301, %s315
      %p317 = scmp.eq.s32.totalorder %s34, 0
      %p318 = por %p316, %p317
      %s320 = sadd.s32 %s319, 1
      %p323 = scmp.eq.s32.totalorder %s28, 1
      %p324 = scmp.ne.s32.totalorder %s319, %s321
      %p325 = scmp.eq.s32.totalorder %s28, 0
      %p326 = por %p324, %p325
      %p327 = scmp.ne.s32.totalorder %s319, %s321
      %p328 = scmp.eq.s32.totalorder %s33, 1
      %p329 = por %p327, %p328
      %p330 = scmp.ne.s32.totalorder %s321, %s322
      %p331 = scmp.eq.s32.totalorder %s33, 0
      %p332 = por %p330, %p331
      %p333 = scmp.ne.s32.totalorder %s321, %s322
      %p334 = scmp.eq.s32.totalorder %s34, 1
      %p335 = por %p333, %p334
      %p337 = scmp.ne.s32.totalorder %s322, %s336
      %p338 = scmp.eq.s32.totalorder %s34, 0
      %p339 = por %p337, %p338
      %s341 = sadd.s32 %s340, 1
      %p344 = scmp.eq.s32.totalorder %s28, 1
      %p345 = scmp.ne.s32.totalorder %s340, %s342
      %p346 = scmp.eq.s32.totalorder %s28, 0
      %p347 = por %p345, %p346
      %p348 = scmp.ne.s32.totalorder %s340, %s342
      %p349 = scmp.eq.s32.totalorder %s33, 1
      %p350 = por %p348, %p349
      %p351 = scmp.ne.s32.totalorder %s342, %s343
      %p352 = scmp.eq.s32.totalorder %s33, 0
      %p353 = por %p351, %p352
      %p354 = scmp.ne.s32.totalorder %s342, %s343
      %p355 = scmp.eq.s32.totalorder %s34, 1
      %p356 = por %p354, %p355
      %p358 = scmp.ne.s32.totalorder %s343, %s357
      %p359 = scmp.eq.s32.totalorder %s34, 0
      %p360 = por %p358, %p359
      %s361 = ssub.s32 %s28, %s35
      %p362 = scmp.eq.s32.totalorder %s361, 0
      %s364 = sadd.s32 %s363, 1
      %s365 = scalar_select %p362, %s363, %s364
      %p368 = pneg %p362
      %p369 = scmp.eq.s32.totalorder %s28, 1
      %p370 = por %p368, %p369
      %p371 = scmp.ne.s32.totalorder %s363, %s366
      %p372 = scmp.eq.s32.totalorder %s28, 0
      %p373 = por %p371, %p372
      %p374 = scmp.ne.s32.totalorder %s363, %s366
      %p375 = scmp.eq.s32.totalorder %s33, 1
      %p376 = por %p374, %p375
      %p377 = scmp.ne.s32.totalorder %s366, %s367
      %p378 = scmp.eq.s32.totalorder %s33, 0
      %p379 = por %p377, %p378
      %p380 = scmp.ne.s32.totalorder %s366, %s367
      %p381 = scmp.eq.s32.totalorder %s34, 1
      %p382 = por %p380, %p381
      %p384 = scmp.ne.s32.totalorder %s367, %s383
      %p385 = scmp.eq.s32.totalorder %s34, 0
      %p386 = por %p384, %p385
      %p387 = scmp.le.s32.totalorder 1, %s28
      %p388 = scmp.lt.s32.totalorder %s28, 3
      %p389 = pnand %p387, %p388
      %p390 = pneg %p389
      // Predicated region
      $region9: #{gcnnet_collective_forward.1} parent=5 // pred_check
        _
      $region10: #{gcnnet_collective_forward.1} parent=5 // pred_check_branch
        %392 = sbr.rel (%p389) target = $region12
      $region11: #{gcnnet_collective_forward.1} parent=5 // pred_region
        %s393 = ssub.s32 %s28, 1
        // Predicated region
        $region13: #{gcnnet_collective_forward.1} parent=11 // pred_check
          %p394 = pneg %p101
        $region14: #{gcnnet_collective_forward.1} parent=11 // pred_check_branch
          %396 = sbr.rel (%p394) target = $region16
        $region15: #{gcnnet_collective_forward.1} parent=11 // pred_region
          _
        $region16: #{gcnnet_collective_forward.1} parent=11 // pred_fallthru
          _
        // Predicated region
        $region17: #{gcnnet_collective_forward.1} parent=11 // pred_check
          %p397 = pneg %p122
        $region18: #{gcnnet_collective_forward.1} parent=11 // pred_check_branch
          %399 = sbr.rel (%p397) target = $region20
        $region19: #{gcnnet_collective_forward.1} parent=11 // pred_region
          _
        $region20: #{gcnnet_collective_forward.1} parent=11 // pred_fallthru
          _
        // Predicated region
        $region21: #{gcnnet_collective_forward.1} parent=11 // pred_check
          %p400 = pneg %p143
        $region22: #{gcnnet_collective_forward.1} parent=11 // pred_check_branch
          %402 = sbr.rel (%p400) target = $region24
        $region23: #{gcnnet_collective_forward.1} parent=11 // pred_region
          _
        $region24: #{gcnnet_collective_forward.1} parent=11 // pred_fallthru
          _
        // Predicated region
        $region25: #{gcnnet_collective_forward.1} parent=11 // pred_check
          %p403 = pneg %p164
        $region26: #{gcnnet_collective_forward.1} parent=11 // pred_check_branch
          %405 = sbr.rel (%p403) target = $region28
        $region27: #{gcnnet_collective_forward.1} parent=11 // pred_region
          _
        $region28: #{gcnnet_collective_forward.1} parent=11 // pred_fallthru
          _
        // Predicated region
        $region29: #{gcnnet_collective_forward.1} parent=11 // pred_check
          %p406 = pneg %p185
        $region30: #{gcnnet_collective_forward.1} parent=11 // pred_check_branch
          %408 = sbr.rel (%p406) target = $region32
        $region31: #{gcnnet_collective_forward.1} parent=11 // pred_region
          _
        $region32: #{gcnnet_collective_forward.1} parent=11 // pred_fallthru
          _
        // Predicated region
        $region33: #{gcnnet_collective_forward.1} parent=11 // pred_check
          %p409 = pneg %p206
        $region34: #{gcnnet_collective_forward.1} parent=11 // pred_check_branch
          %411 = sbr.rel (%p409) target = $region36
        $region35: #{gcnnet_collective_forward.1} parent=11 // pred_region
          _
        $region36: #{gcnnet_collective_forward.1} parent=11 // pred_fallthru
          _
        // Predicated region
        $region37: #{gcnnet_collective_forward.1} parent=11 // pred_check
          %p412 = pneg %p227
        $region38: #{gcnnet_collective_forward.1} parent=11 // pred_check_branch
          %414 = sbr.rel (%p412) target = $region40
        $region39: #{gcnnet_collective_forward.1} parent=11 // pred_region
          _
        $region40: #{gcnnet_collective_forward.1} parent=11 // pred_fallthru
          _
        // Predicated region
        $region41: #{gcnnet_collective_forward.1} parent=11 // pred_check
          %p415 = pneg %p248
        $region42: #{gcnnet_collective_forward.1} parent=11 // pred_check_branch
          %417 = sbr.rel (%p415) target = $region44
        $region43: #{gcnnet_collective_forward.1} parent=11 // pred_region
          _
        $region44: #{gcnnet_collective_forward.1} parent=11 // pred_fallthru
          _
        // Predicated region
        $region45: #{gcnnet_collective_forward.1} parent=11 // pred_check
          %p418 = pneg %p269
        $region46: #{gcnnet_collective_forward.1} parent=11 // pred_check_branch
          %420 = sbr.rel (%p418) target = $region48
        $region47: #{gcnnet_collective_forward.1} parent=11 // pred_region
          _
        $region48: #{gcnnet_collective_forward.1} parent=11 // pred_fallthru
          _
        // Predicated region
        $region49: #{gcnnet_collective_forward.1} parent=11 // pred_check
          %p421 = pneg %p290
        $region50: #{gcnnet_collective_forward.1} parent=11 // pred_check_branch
          %423 = sbr.rel (%p421) target = $region52
        $region51: #{gcnnet_collective_forward.1} parent=11 // pred_region
          _
        $region52: #{gcnnet_collective_forward.1} parent=11 // pred_fallthru
          _
        // Predicated region
        $region53: #{gcnnet_collective_forward.1} parent=11 // pred_check
          %p424 = pneg %p311
        $region54: #{gcnnet_collective_forward.1} parent=11 // pred_check_branch
          %426 = sbr.rel (%p424) target = $region56
        $region55: #{gcnnet_collective_forward.1} parent=11 // pred_region
          %s428 = ssub.s32 16, 16
          %429 = vsyncadd [#allocation5], %s428
          %s431 = sshll.u32 [#allocation6], 4
          %s432 = int_to_ptr.vmem [resolvable:$true] %s431
          %434 = dma.hbm_to_vmem [thread:$0]  %s12, 16, %s432, [#allocation5]
        $region56: #{gcnnet_collective_forward.1} parent=11 // pred_fallthru
          _
        // Predicated region
        $region57: #{gcnnet_collective_forward.1} parent=11 // pred_check
          %p435 = pneg %p332
        $region58: #{gcnnet_collective_forward.1} parent=11 // pred_check_branch
          %437 = sbr.rel (%p435) target = $region60
        $region59: #{gcnnet_collective_forward.1} parent=11 // pred_region
          %s439 = ssub.s32 512, 512
          %440 = vsyncadd [#allocation8], %s439
          %s441 = sshll.u32 [#allocation7], 4
          %s442 = int_to_ptr.vmem [resolvable:$true] %s441
          %447 = dma.hbm_to_vmem [thread:$0]  %s13, 512, %s442, [#allocation8], 128, 128, 8
        $region60: #{gcnnet_collective_forward.1} parent=11 // pred_fallthru
          _
        // Predicated region
        $region61: #{gcnnet_collective_forward.1} parent=11 // pred_check
          %p448 = pneg %p353
        $region62: #{gcnnet_collective_forward.1} parent=11 // pred_check_branch
          %450 = sbr.rel (%p448) target = $region64
        $region63: #{gcnnet_collective_forward.1} parent=11 // pred_region
          _
        $region64: #{gcnnet_collective_forward.1} parent=11 // pred_fallthru
          _
      $region12: #{gcnnet_collective_forward.1} parent=5 // pred_fallthru
        _
      %p451 = scmp.lt.s32.totalorder %s28, 2
      // Predicated region
      $region65: #{gcnnet_collective_forward.1} parent=5 // pred_check
        %p452 = pneg %p451
      $region66: #{gcnnet_collective_forward.1} parent=5 // pred_check_branch
        %454 = sbr.rel (%p452) target = $region68
      $region67: #{gcnnet_collective_forward.1} parent=5 // pred_region
        // Predicated region
        $region69: #{gcnnet_collective_forward.1} parent=67 // pred_check
          %p455 = pneg %p48
        $region70: #{gcnnet_collective_forward.1} parent=67 // pred_check_branch
          %457 = sbr.rel (%p455) target = $region72
        $region71: #{gcnnet_collective_forward.1} parent=67 // pred_region
          %s458 = sand.u32 %s38, 1
          %s459 = scalar_lea.sflag [#allocation3], %s458
          %s460 = sand.u32 %s38, 1
          %s461 = smul.addr %s460, 8
          %s462 = scalar_lea.vmem [#allocation2], %s461
          %s464 = ssub.s32 128, 128
          %465 = vsyncadd %s459, %s464
          %s466 = smul.addr %s28, 128
          %s467 = scalar_lea.hbm %s0, %s466
          %s469 = sshll.u32 %s462, 4
          %s470 = int_to_ptr.vmem [resolvable:$true] %s469
          %472 = dma.hbm_to_vmem [thread:$0]  %s467, 128, %s470, %s459
        $region72: #{gcnnet_collective_forward.1} parent=67 // pred_fallthru
          _
        // Predicated region
        $region73: #{gcnnet_collective_forward.1} parent=67 // pred_check
          %p473 = pneg %p74
        $region74: #{gcnnet_collective_forward.1} parent=67 // pred_check_branch
          %475 = sbr.rel (%p473) target = $region76
        $region75: #{gcnnet_collective_forward.1} parent=67 // pred_region
          %s476 = sand.u32 %s28, 1
          %s477 = scalar_lea.sflag [#allocation5], %s476
          %s478 = sand.u32 %s64, 1
          %s479 = smul.addr %s478, 8
          %s480 = scalar_lea.vmem [#allocation4], %s479
          %s482 = ssub.s32 128, 128
          %483 = vsyncadd %s477, %s482
          %s484 = smul.addr %s28, 128
          %s485 = scalar_lea.hbm %s1, %s484
          %s487 = sshll.u32 %s480, 4
          %s488 = int_to_ptr.vmem [resolvable:$true] %s487
          %490 = dma.hbm_to_vmem [thread:$0]  %s485, 128, %s488, %s477
        $region76: #{gcnnet_collective_forward.1} parent=67 // pred_fallthru
          _
      $region68: #{gcnnet_collective_forward.1} parent=5 // pred_fallthru
        _
      %p491 = scmp.le.s32.totalorder 1, %s28
      %p492 = scmp.lt.s32.totalorder %s28, 3
      %p493 = pnand %p491, %p492
      %p494 = pneg %p493
      // Predicated region
      $region77: #{gcnnet_collective_forward.1} parent=5 // pred_check
        _
      $region78: #{gcnnet_collective_forward.1} parent=5 // pred_check_branch
        %496 = sbr.rel (%p493) target = $region80
      $region79: #{gcnnet_collective_forward.1} parent=5 // pred_region
        %s497 = ssub.s32 %s28, 1
        %s498 = sand.u32 %s41, 1
        %s499 = scalar_lea.sflag [#allocation3], %s498
        %s500 = sand.u32 %s41, 1
        %s501 = smul.addr %s500, 8
        %s502 = scalar_lea.vmem [#allocation2], %s501
        // Predicated region
        $region81: #{gcnnet_collective_forward.1} parent=79 // pred_check
          %p503 = pneg %p54
        $region82: #{gcnnet_collective_forward.1} parent=79 // pred_check_branch
          %505 = sbr.rel (%p503) target = $region84
        $region83: #{gcnnet_collective_forward.1} parent=79 // pred_region
          %506 = dma.done %s499, 128
        $region84: #{gcnnet_collective_forward.1} parent=79 // pred_fallthru
          _
        %s507 = sand.u32 %s33, 1
        %s508 = scalar_lea.sflag [#allocation5], %s507
        %s509 = sand.u32 %s67, 1
        %s510 = smul.addr %s509, 8
        %s511 = scalar_lea.vmem [#allocation4], %s510
        // Predicated region
        $region85: #{gcnnet_collective_forward.1} parent=79 // pred_check
          %p512 = pneg %p80
        $region86: #{gcnnet_collective_forward.1} parent=79 // pred_check_branch
          %514 = sbr.rel (%p512) target = $region88
        $region87: #{gcnnet_collective_forward.1} parent=79 // pred_region
          %515 = dma.done %s508, 128
        $region88: #{gcnnet_collective_forward.1} parent=79 // pred_fallthru
          _
        // Predicated region
        $region89: #{gcnnet_collective_forward.1} parent=79 // pred_check
          %p516 = pneg %p311
        $region90: #{gcnnet_collective_forward.1} parent=79 // pred_check_branch
          %518 = sbr.rel (%p516) target = $region92
        $region91: #{gcnnet_collective_forward.1} parent=79 // pred_region
          %519 = dma.done [#allocation5], 16
        $region92: #{gcnnet_collective_forward.1} parent=79 // pred_fallthru
          _
        // Predicated region
        $region93: #{gcnnet_collective_forward.1} parent=79 // pred_check
          %p520 = pneg %p332
        $region94: #{gcnnet_collective_forward.1} parent=79 // pred_check_branch
          %522 = sbr.rel (%p520) target = $region96
        $region95: #{gcnnet_collective_forward.1} parent=79 // pred_region
          %523 = dma.done [#allocation8], 512
        $region96: #{gcnnet_collective_forward.1} parent=79 // pred_fallthru
          _
        %s524 = sand.u32 %s41, 1
        %s525 = scalar_lea.sflag [#allocation3], %s524
        %s526 = sand.u32 %s41, 1
        %s527 = smul.addr %s526, 8
        %s528 = scalar_lea.vmem [#allocation2], %s527
        %p529 = pneg %p54
        %p530 = pneg %p51
        %s531 = sand.u32 %s33, 1
        %s532 = scalar_lea.sflag [#allocation5], %s531
        %s533 = sand.u32 %s67, 1
        %s534 = smul.addr %s533, 8
        %s535 = scalar_lea.vmem [#allocation4], %s534
        %p536 = pneg %p80
        %p537 = pneg %p77
        %p538 = pneg %p101
        %p539 = pneg %p98
        %p540 = pneg %p122
        %p541 = pneg %p119
        %p542 = pneg %p143
        %p543 = pneg %p140
        %p544 = pneg %p164
        %p545 = pneg %p161
        %p546 = pneg %p185
        %p547 = pneg %p182
        %p548 = pneg %p206
        %p549 = pneg %p203
        %p550 = pneg %p227
        %p551 = pneg %p224
        %p552 = pneg %p248
        %p553 = pneg %p245
        %p554 = pneg %p269
        %p555 = pneg %p266
        %p556 = pneg %p290
        %p557 = pneg %p287
        %p558 = pneg %p311
        %p559 = pneg %p308
        %p560 = pneg %p332
        %p561 = pneg %p329
        %p562 = pneg %p353
        %p563 = pneg %p350
        %p564 = pneg %p379
        %p565 = pneg %p376
        %p566 = scmp.lt.s32.totalorder %s33, 1
        %s567 = scalar_select %p566, %s33, 1
        %s568 = smul.addr %s567, 8
        %s569 = scalar_lea.vmem %s15, %s568
        %p570 = scmp.lt.s32.totalorder %s33, 1
        %s571 = scalar_select %p570, %s33, 1
        %s572 = smul.addr %s571, 8
        %s573 = scalar_lea.vmem %s15, %s572
        %v574 = vld [vmem:[%s502] sm:$0xff]
        %v575 = vld [vmem:[%s2] sm:$0xff]
        %v576 = vld [vmem:[%s2 + $0x8] sm:$0xff]
        %v577 = vld [vmem:[%s2 + $0x10] sm:$0xff]
        %v578 = vld [vmem:[%s2 + $0x18] sm:$0xff]
        %v579 = vld [vmem:[%s2 + $0x20] sm:$0xff]
        %v580 = vld [vmem:[%s2 + $0x28] sm:$0xff]
        %v581 = vld [vmem:[%s2 + $0x30] sm:$0xff]
        %v582 = vld [vmem:[%s2 + $0x38] sm:$0xff]
        %v583 = vld [vmem:[%s3] sm:$0x1]
        %v585 = vlaneseq
        %v586 = vshrl.u32 %v585, 7
        %v587 = vsub.s32 0, %v586
        %v588 = vrot.slane %v583, %v587
        %vm590 = vcmask 523264
        %v592 = vsel %vm590, %v574, 0
        %594 = vmatprep.subr.mxu0 0.0
        %595 = vmatpush1.msra.mxu0 0.0
        %596 = vmatprep.subr.mxu0 0.0
        %597 = vmatpush1.msra.mxu0 0.0
        %598 = vmatprep.subr.mxu0 0.0
        %599 = vmatpush1.msra.mxu0 0.0
        %600 = vmatprep.subr.mxu0 0.0
        %601 = vmatpush1.msra.mxu0 0.0
        %602 = vmatprep.subr.mxu0 0.0
        %603 = vmatpush1.msra.mxu0 0.0
        %604 = vmatprep.subr.mxu0 0.0
        %605 = vmatpush1.msra.mxu0 0.0
        %606 = vmatprep.subr.mxu0 0.0
        %607 = vmatpush1.msra.mxu0 0.0
        %608 = vmatprep.subr.mxu0 0.0
        %609 = vmatpush1.msra.mxu0 0.0
        %610 = vmatprep.subr.mxu0 0.0
        %611 = vmatpush1.msra.mxu0 %v582
        %612 = vmatprep.subr.mxu0 0.0
        %613 = vmatpush1.msra.mxu0 %v581
        %614 = vmatprep.subr.mxu0 0.0
        %615 = vmatpush1.msra.mxu0 %v580
        %616 = vmatprep.subr.mxu0 0.0
        %617 = vmatpush1.msra.mxu0 %v579
        %618 = vmatprep.subr.mxu0 0.0
        %619 = vmatpush1.msra.mxu0 %v578
        %620 = vmatprep.subr.mxu0 0.0
        %621 = vmatpush1.msra.mxu0 %v577
        %622 = vmatprep.subr.mxu0 0.0
        %623 = vmatpush1.msra.mxu0 %v576
        %624 = vmatprep.subr.mxu0 0.0
        %625 = vmatpush1.msra.mxu0 %v575
        %626 = vmatprep.subr.mxu0 0.0
        %627 = vmatpush2.msra.mxu0 0.0
        %628 = vmatprep.subr.mxu0 0.0
        %629 = vmatpush2.msra.mxu0 0.0
        %630 = vmatprep.subr.mxu0 0.0
        %631 = vmatpush2.msra.mxu0 0.0
        %632 = vmatprep.subr.mxu0 0.0
        %633 = vmatpush2.msra.mxu0 0.0
        %634 = vmatprep.subr.mxu0 0.0
        %635 = vmatpush2.msra.mxu0 0.0
        %636 = vmatprep.subr.mxu0 0.0
        %637 = vmatpush2.msra.mxu0 0.0
        %638 = vmatprep.subr.mxu0 0.0
        %639 = vmatpush2.msra.mxu0 0.0
        %640 = vmatprep.subr.mxu0 0.0
        %641 = vmatpush2.msra.mxu0 0.0
        %642 = vmatprep.subr.mxu0 0.0
        %643 = vmatpush2.msra.mxu0 0.0
        %644 = vmatprep.subr.mxu0 0.0
        %645 = vmatpush2.msra.mxu0 0.0
        %646 = vmatprep.subr.mxu0 0.0
        %647 = vmatpush2.msra.mxu0 0.0
        %648 = vmatprep.subr.mxu0 0.0
        %649 = vmatpush2.msra.mxu0 0.0
        %650 = vmatprep.subr.mxu0 0.0
        %651 = vmatpush2.msra.mxu0 0.0
        %652 = vmatprep.subr.mxu0 0.0
        %653 = vmatpush2.msra.mxu0 0.0
        %654 = vmatprep.subr.mxu0 0.0
        %655 = vmatpush2.msra.mxu0 0.0
        %656 = vmatprep.subr.mxu0 0.0
        %657 = vmatpush2.msra.mxu0 0.0
        %658 = vmatprep.mubr.f32.mxu0 0.0
        %659 = vmatmul.mubr.f32.gmra.mxu0 %v592
        %v660 = vpop.f32.mrf.mxu0
        %v661 = vadd.f32 %v588, %v660
        %v662 = vpop.f32.mrf.mxu0
        %663 = vdwg.mxu0
        %vm664 = vcmask 261120
        %v665 = vsel %vm664, %v661, 0.0
        %666 = vadd.xlane.f32.xlu0 %v665
        %v667 = vpop.xlane.xlu0 %666
        %v668 = vrcp.pop 32.0
        %v669 = vmul.f32 %v667, %v668
        %v670 = vsub.f32 %v661, %v669
        %v671 = vmul.f32 %v670, %v670
        %v672 = vsel %vm664, %v671, 0.0
        %673 = vadd.xlane.f32.xlu0 %v672
        %v674 = vpop.xlane.xlu0 %673
        %v675 = vmul.f32 %v674, %v668
        %v676 = vadd.f32 %v675, 1e-05
        %v677 = vrsqrt.pop %v676
        %v678 = vmul.f32 %v670, %v677
        %v679 = vld [vmem:[%s4] sm:$0x1]
        %v681 = vlaneseq
        %v682 = vshrl.u32 %v681, 7
        %v683 = vsub.s32 0, %v682
        %v684 = vrot.slane %v679, %v683
        %v686 = vmul.f32 %v678, %v684
        %v687 = vld [vmem:[%s5] sm:$0x1]
        %v689 = vlaneseq
        %v690 = vshrl.u32 %v689, 7
        %v691 = vsub.s32 0, %v690
        %v692 = vrot.slane %v687, %v691
        %v694 = vadd.f32 %v686, %v692
        %v695 = vmax.f32 %v694, 0.0
        %v696 = vld [vmem:[%s511] sm:$0xff]
        %698 = vrot.lane.b32.xlu0 %v696, 126
        %v699 = vpop.permute.xlu0 %698
        %v701 = vadd.f32 %v696, %v699
        %v702 = vmul.f32 %v701, 0.5
        %v703 = vmul.f32 %v702, %v702
        %705 = vrot.lane.b32.xlu0 %v703, 127
        %v706 = vpop.permute.xlu0 %705
        %v708 = vadd.f32 %v703, %v706
        %710 = vrot.lane.b32.xlu0 %v708, 2
        %v711 = vpop.permute.xlu0 %710
        %vm713 = vcmask 15360
        %v714 = vsel %vm713, %v702, %v711
        %vm715 = vcmask 23552
        %v716 = vsel %vm715, %v714, 1.0
        %v717 = vmul.f32 %v702, -2.0
        %718 = vrot.lane.b32.xlu0 %v708, 3
        %v719 = vpop.permute.xlu0 %718
        %v721 = vsel %vm713, %v717, 1.0
        %v722 = vsel %vm715, %v721, %v719
        %vm723 = vcmask 31744
        %v725 = vsel %vm723, %v716, 0
        %v728 = vsel %vm723, %v722, 0
        %730 = vmatprep.subr.mxu0 0.0
        %731 = vmatpush1.xpose.msra.mxu0 0.0
        %732 = vmatprep.subr.mxu0 0.0
        %733 = vmatpush1.xpose.msra.mxu0 0.0
        %734 = vmatprep.subr.mxu0 0.0
        %735 = vmatpush1.xpose.msra.mxu0 0.0
        %736 = vmatprep.subr.mxu0 0.0
        %737 = vmatpush1.xpose.msra.mxu0 0.0
        %738 = vmatprep.subr.mxu0 0.0
        %739 = vmatpush1.xpose.msra.mxu0 0.0
        %740 = vmatprep.subr.mxu0 0.0
        %741 = vmatpush1.xpose.msra.mxu0 0.0
        %742 = vmatprep.subr.mxu0 0.0
        %743 = vmatpush1.xpose.msra.mxu0 0.0
        %744 = vmatprep.subr.mxu0 0.0
        %745 = vmatpush1.xpose.msra.mxu0 0.0
        %746 = vmatprep.subr.mxu0 0.0
        %747 = vmatpush1.xpose.msra.mxu0 0.0
        %748 = vmatprep.subr.mxu0 0.0
        %749 = vmatpush1.xpose.msra.mxu0 0.0
        %750 = vmatprep.subr.mxu0 0.0
        %751 = vmatpush1.xpose.msra.mxu0 0.0
        %752 = vmatprep.subr.mxu0 0.0
        %753 = vmatpush1.xpose.msra.mxu0 0.0
        %754 = vmatprep.subr.mxu0 0.0
        %755 = vmatpush1.xpose.msra.mxu0 0.0
        %756 = vmatprep.subr.mxu0 0.0
        %757 = vmatpush1.xpose.msra.mxu0 0.0
        %758 = vmatprep.subr.mxu0 0.0
        %759 = vmatpush1.xpose.msra.mxu0 0.0
        %760 = vmatprep.subr.mxu0 0.0
        %761 = vmatpush1.xpose.msra.mxu0 %v728
        %762 = vmatprep.subr.mxu0 0.0
        %763 = vmatpush2.xpose.msra.mxu0 0.0
        %764 = vmatprep.subr.mxu0 0.0
        %765 = vmatpush2.xpose.msra.mxu0 0.0
        %766 = vmatprep.subr.mxu0 0.0
        %767 = vmatpush2.xpose.msra.mxu0 0.0
        %768 = vmatprep.subr.mxu0 0.0
        %769 = vmatpush2.xpose.msra.mxu0 0.0
        %770 = vmatprep.subr.mxu0 0.0
        %771 = vmatpush2.xpose.msra.mxu0 0.0
        %772 = vmatprep.subr.mxu0 0.0
        %773 = vmatpush2.xpose.msra.mxu0 0.0
        %774 = vmatprep.subr.mxu0 0.0
        %775 = vmatpush2.xpose.msra.mxu0 0.0
        %776 = vmatprep.subr.mxu0 0.0
        %777 = vmatpush2.xpose.msra.mxu0 0.0
        %778 = vmatprep.subr.mxu0 0.0
        %779 = vmatpush2.xpose.msra.mxu0 0.0
        %780 = vmatprep.subr.mxu0 0.0
        %781 = vmatpush2.xpose.msra.mxu0 0.0
        %782 = vmatprep.subr.mxu0 0.0
        %783 = vmatpush2.xpose.msra.mxu0 0.0
        %784 = vmatprep.subr.mxu0 0.0
        %785 = vmatpush2.xpose.msra.mxu0 0.0
        %786 = vmatprep.subr.mxu0 0.0
        %787 = vmatpush2.xpose.msra.mxu0 0.0
        %788 = vmatprep.subr.mxu0 0.0
        %789 = vmatpush2.xpose.msra.mxu0 0.0
        %790 = vmatprep.subr.mxu0 0.0
        %791 = vmatpush2.xpose.msra.mxu0 0.0
        %792 = vmatprep.subr.mxu0 0.0
        %793 = vmatpush2.xpose.msra.mxu0 0.0
        %794 = vmatprep.mubr.f32.mxu0 0.0
        %795 = vmatmul.mubr.f32.gmra.mxu0 %v725
        %v796 = vpop.f32.mrf.mxu0
        %v797 = vadd.f32 0.0, %v796
        %v798 = vpop.f32.mrf.mxu0
        %799 = vdwg.mxu0
        %vm800 = vcmp.gt.f32.partialorder %v797, 2.56
        %v801 = vld [vmem:[%s6] sm:$0xff]
        %v802 = vld [vmem:[%s6 + $0x8] sm:$0xff]
        %v803 = vld [vmem:[%s6 + $0x10] sm:$0xff]
        %v804 = vld [vmem:[%s6 + $0x18] sm:$0xff]
        %v805 = vld [vmem:[%s7] sm:$0x1]
        %v807 = vlaneseq
        %v808 = vshrl.u32 %v807, 7
        %v809 = vsub.s32 0, %v808
        %v810 = vrot.slane %v805, %v809
        %v813 = vsel %vm664, %v695, 0
        %815 = vmatprep.subr.mxu0 0.0
        %816 = vmatpush1.msra.mxu0 0.0
        %817 = vmatprep.subr.mxu0 0.0
        %818 = vmatpush1.msra.mxu0 0.0
        %819 = vmatprep.subr.mxu0 0.0
        %820 = vmatpush1.msra.mxu0 0.0
        %821 = vmatprep.subr.mxu0 0.0
        %822 = vmatpush1.msra.mxu0 0.0
        %823 = vmatprep.subr.mxu0 0.0
        %824 = vmatpush1.msra.mxu0 0.0
        %825 = vmatprep.subr.mxu0 0.0
        %826 = vmatpush1.msra.mxu0 0.0
        %827 = vmatprep.subr.mxu0 0.0
        %828 = vmatpush1.msra.mxu0 0.0
        %829 = vmatprep.subr.mxu0 0.0
        %830 = vmatpush1.msra.mxu0 0.0
        %831 = vmatprep.subr.mxu0 0.0
        %832 = vmatpush1.msra.mxu0 0.0
        %833 = vmatprep.subr.mxu0 0.0
        %834 = vmatpush1.msra.mxu0 0.0
        %835 = vmatprep.subr.mxu0 0.0
        %836 = vmatpush1.msra.mxu0 0.0
        %837 = vmatprep.subr.mxu0 0.0
        %838 = vmatpush1.msra.mxu0 0.0
        %839 = vmatprep.subr.mxu0 0.0
        %840 = vmatpush1.msra.mxu0 %v804
        %841 = vmatprep.subr.mxu0 0.0
        %842 = vmatpush1.msra.mxu0 %v803
        %843 = vmatprep.subr.mxu0 0.0
        %844 = vmatpush1.msra.mxu0 %v802
        %845 = vmatprep.subr.mxu0 0.0
        %846 = vmatpush1.msra.mxu0 %v801
        %847 = vmatprep.subr.mxu0 0.0
        %848 = vmatpush2.msra.mxu0 0.0
        %849 = vmatprep.subr.mxu0 0.0
        %850 = vmatpush2.msra.mxu0 0.0
        %851 = vmatprep.subr.mxu0 0.0
        %852 = vmatpush2.msra.mxu0 0.0
        %853 = vmatprep.subr.mxu0 0.0
        %854 = vmatpush2.msra.mxu0 0.0
        %855 = vmatprep.subr.mxu0 0.0
        %856 = vmatpush2.msra.mxu0 0.0
        %857 = vmatprep.subr.mxu0 0.0
        %858 = vmatpush2.msra.mxu0 0.0
        %859 = vmatprep.subr.mxu0 0.0
        %860 = vmatpush2.msra.mxu0 0.0
        %861 = vmatprep.subr.mxu0 0.0
        %862 = vmatpush2.msra.mxu0 0.0
        %863 = vmatprep.subr.mxu0 0.0
        %864 = vmatpush2.msra.mxu0 0.0
        %865 = vmatprep.subr.mxu0 0.0
        %866 = vmatpush2.msra.mxu0 0.0
        %867 = vmatprep.subr.mxu0 0.0
        %868 = vmatpush2.msra.mxu0 0.0
        %869 = vmatprep.subr.mxu0 0.0
        %870 = vmatpush2.msra.mxu0 0.0
        %871 = vmatprep.subr.mxu0 0.0
        %872 = vmatpush2.msra.mxu0 0.0
        %873 = vmatprep.subr.mxu0 0.0
        %874 = vmatpush2.msra.mxu0 0.0
        %875 = vmatprep.subr.mxu0 0.0
        %876 = vmatpush2.msra.mxu0 0.0
        %877 = vmatprep.subr.mxu0 0.0
        %878 = vmatpush2.msra.mxu0 0.0
        %879 = vmatprep.mubr.f32.mxu0 0.0
        %880 = vmatmul.mubr.f32.gmra.mxu0 %v813
        %v881 = vpop.f32.mrf.mxu0
        %v882 = vadd.f32 %v810, %v881
        %v883 = vpop.f32.mrf.mxu0
        %884 = vdwg.mxu0
        %v885 = vld [vmem:[%s8] sm:$0xff]
        %v886 = vld [vmem:[%s8 + $0x8] sm:$0xff]
        %v887 = vld [vmem:[%s8 + $0x10] sm:$0xff]
        %v888 = vld [vmem:[%s8 + $0x18] sm:$0xff]
        %889 = vmatprep.subr.mxu0 0.0
        %890 = vmatpush1.msra.mxu0 0.0
        %891 = vmatprep.subr.mxu0 0.0
        %892 = vmatpush1.msra.mxu0 0.0
        %893 = vmatprep.subr.mxu0 0.0
        %894 = vmatpush1.msra.mxu0 0.0
        %895 = vmatprep.subr.mxu0 0.0
        %896 = vmatpush1.msra.mxu0 0.0
        %897 = vmatprep.subr.mxu0 0.0
        %898 = vmatpush1.msra.mxu0 0.0
        %899 = vmatprep.subr.mxu0 0.0
        %900 = vmatpush1.msra.mxu0 0.0
        %901 = vmatprep.subr.mxu0 0.0
        %902 = vmatpush1.msra.mxu0 0.0
        %903 = vmatprep.subr.mxu0 0.0
        %904 = vmatpush1.msra.mxu0 0.0
        %905 = vmatprep.subr.mxu0 0.0
        %906 = vmatpush1.msra.mxu0 0.0
        %907 = vmatprep.subr.mxu0 0.0
        %908 = vmatpush1.msra.mxu0 0.0
        %909 = vmatprep.subr.mxu0 0.0
        %910 = vmatpush1.msra.mxu0 0.0
        %911 = vmatprep.subr.mxu0 0.0
        %912 = vmatpush1.msra.mxu0 0.0
        %913 = vmatprep.subr.mxu0 0.0
        %914 = vmatpush1.msra.mxu0 %v888
        %915 = vmatprep.subr.mxu0 0.0
        %916 = vmatpush1.msra.mxu0 %v887
        %917 = vmatprep.subr.mxu0 0.0
        %918 = vmatpush1.msra.mxu0 %v886
        %919 = vmatprep.subr.mxu0 0.0
        %920 = vmatpush1.msra.mxu0 %v885
        %921 = vmatprep.subr.mxu0 0.0
        %922 = vmatpush2.msra.mxu0 0.0
        %923 = vmatprep.subr.mxu0 0.0
        %924 = vmatpush2.msra.mxu0 0.0
        %925 = vmatprep.subr.mxu0 0.0
        %926 = vmatpush2.msra.mxu0 0.0
        %927 = vmatprep.subr.mxu0 0.0
        %928 = vmatpush2.msra.mxu0 0.0
        %929 = vmatprep.subr.mxu0 0.0
        %930 = vmatpush2.msra.mxu0 0.0
        %931 = vmatprep.subr.mxu0 0.0
        %932 = vmatpush2.msra.mxu0 0.0
        %933 = vmatprep.subr.mxu0 0.0
        %934 = vmatpush2.msra.mxu0 0.0
        %935 = vmatprep.subr.mxu0 0.0
        %936 = vmatpush2.msra.mxu0 0.0
        %937 = vmatprep.subr.mxu0 0.0
        %938 = vmatpush2.msra.mxu0 0.0
        %939 = vmatprep.subr.mxu0 0.0
        %940 = vmatpush2.msra.mxu0 0.0
        %941 = vmatprep.subr.mxu0 0.0
        %942 = vmatpush2.msra.mxu0 0.0
        %943 = vmatprep.subr.mxu0 0.0
        %944 = vmatpush2.msra.mxu0 0.0
        %945 = vmatprep.subr.mxu0 0.0
        %946 = vmatpush2.msra.mxu0 0.0
        %947 = vmatprep.subr.mxu0 0.0
        %948 = vmatpush2.msra.mxu0 0.0
        %949 = vmatprep.subr.mxu0 0.0
        %950 = vmatpush2.msra.mxu0 0.0
        %951 = vmatprep.subr.mxu0 0.0
        %952 = vmatpush2.msra.mxu0 0.0
        %953 = vmatprep.mubr.f32.mxu0 0.0
        %954 = vmatmul.mubr.f32.gmra.mxu0 %v813
        %v955 = vpop.f32.mrf.mxu0
        %v956 = vadd.f32 0.0, %v955
        %v957 = vpop.f32.mrf.mxu0
        %958 = vdwg.mxu0
        %v959 = vld [vmem:[%s9] sm:$0x3]
        %v960 = vld [vmem:[%s10] sm:$0x3]
        %962 = vrot.lane.b32.xlu0 %v882, 96
        %v963 = vpop.permute.xlu0 %962
        %vm964 = vcmask 130048
        %v965 = vsel %vm964, %v882, 0
        %v967 = vsel %vm964, %v963, 0
        %969 = vmatprep.subr.mxu0 0.0
        %970 = vmatpush1.xpose.msra.mxu0 0.0
        %971 = vmatprep.subr.mxu0 0.0
        %972 = vmatpush1.xpose.msra.mxu0 0.0
        %973 = vmatprep.subr.mxu0 0.0
        %974 = vmatpush1.xpose.msra.mxu0 0.0
        %975 = vmatprep.subr.mxu0 0.0
        %976 = vmatpush1.xpose.msra.mxu0 0.0
        %977 = vmatprep.subr.mxu0 0.0
        %978 = vmatpush1.xpose.msra.mxu0 0.0
        %979 = vmatprep.subr.mxu0 0.0
        %980 = vmatpush1.xpose.msra.mxu0 0.0
        %981 = vmatprep.subr.mxu0 0.0
        %982 = vmatpush1.xpose.msra.mxu0 0.0
        %983 = vmatprep.subr.mxu0 0.0
        %984 = vmatpush1.xpose.msra.mxu0 0.0
        %985 = vmatprep.subr.mxu0 0.0
        %986 = vmatpush1.xpose.msra.mxu0 0.0
        %987 = vmatprep.subr.mxu0 0.0
        %988 = vmatpush1.xpose.msra.mxu0 0.0
        %989 = vmatprep.subr.mxu0 0.0
        %990 = vmatpush1.xpose.msra.mxu0 0.0
        %991 = vmatprep.subr.mxu0 0.0
        %992 = vmatpush1.xpose.msra.mxu0 0.0
        %993 = vmatprep.subr.mxu0 0.0
        %994 = vmatpush1.xpose.msra.mxu0 0.0
        %995 = vmatprep.subr.mxu0 0.0
        %996 = vmatpush1.xpose.msra.mxu0 0.0
        %997 = vmatprep.subr.mxu0 0.0
        %998 = vmatpush1.xpose.msra.mxu0 0.0
        %999 = vmatprep.subr.mxu0 0.0
        %1000 = vmatpush1.xpose.msra.mxu0 %v967
        %1001 = vmatprep.subr.mxu0 0.0
        %1002 = vmatpush2.xpose.msra.mxu0 0.0
        %1003 = vmatprep.subr.mxu0 0.0
        %1004 = vmatpush2.xpose.msra.mxu0 0.0
        %1005 = vmatprep.subr.mxu0 0.0
        %1006 = vmatpush2.xpose.msra.mxu0 0.0
        %1007 = vmatprep.subr.mxu0 0.0
        %1008 = vmatpush2.xpose.msra.mxu0 0.0
        %1009 = vmatprep.subr.mxu0 0.0
        %1010 = vmatpush2.xpose.msra.mxu0 0.0
        %1011 = vmatprep.subr.mxu0 0.0
        %1012 = vmatpush2.xpose.msra.mxu0 0.0
        %1013 = vmatprep.subr.mxu0 0.0
        %1014 = vmatpush2.xpose.msra.mxu0 0.0
        %1015 = vmatprep.subr.mxu0 0.0
        %1016 = vmatpush2.xpose.msra.mxu0 0.0
        %1017 = vmatprep.subr.mxu0 0.0
        %1018 = vmatpush2.xpose.msra.mxu0 0.0
        %1019 = vmatprep.subr.mxu0 0.0
        %1020 = vmatpush2.xpose.msra.mxu0 0.0
        %1021 = vmatprep.subr.mxu0 0.0
        %1022 = vmatpush2.xpose.msra.mxu0 0.0
        %1023 = vmatprep.subr.mxu0 0.0
        %1024 = vmatpush2.xpose.msra.mxu0 0.0
        %1025 = vmatprep.subr.mxu0 0.0
        %1026 = vmatpush2.xpose.msra.mxu0 0.0
        %1027 = vmatprep.subr.mxu0 0.0
        %1028 = vmatpush2.xpose.msra.mxu0 0.0
        %1029 = vmatprep.subr.mxu0 0.0
        %1030 = vmatpush2.xpose.msra.mxu0 0.0
        %1031 = vmatprep.subr.mxu0 0.0
        %1032 = vmatpush2.xpose.msra.mxu0 0.0
        %1033 = vmatprep.mubr.f32.mxu0 0.0
        %1034 = vmatmul.mubr.f32.gmra.mxu0 %v965
        %v1035 = vpop.f32.mrf.mxu0
        %v1036 = vadd.f32 0.0, %v1035
        %v1037 = vpop.f32.mrf.mxu0
        %1038 = vdwg.mxu0
        %v1039 = vmul.f32 %v1036, 0.25
        %v1040 = vsel %vm800, -1e+09, %v1039
        %vm1041 = vcmask 64512
        %v1042 = vsel %vm1041, %v1040, -inf
        %1043 = vmax.xlane.f32.xlu0 %v1042
        %v1044 = vpop.xlane.xlu0 %1043
        %v1045 = vsub.f32 %v1040, %v1044
        %v1046 = vmul.f32 %v1045, 1.442695
        %v1047 = vpow.pop %v1046
        %v1048 = vsel %vm1041, %v1047, 0.0
        %1049 = vadd.xlane.f32.xlu0 %v1048
        %v1050 = vpop.xlane.xlu0 %1049
        %v1051 = vrcp.pop %v1050
        %v1052 = vmul.f32 %v1047, %v1051
        %v1054 = vsel %vm1041, %v1052, 0
        %1056 = vmatprep.subr.mxu0 0.0
        %1057 = vmatpush1.msra.mxu0 0.0
        %1058 = vmatprep.subr.mxu0 0.0
        %1059 = vmatpush1.msra.mxu0 0.0
        %1060 = vmatprep.subr.mxu0 0.0
        %1061 = vmatpush1.msra.mxu0 0.0
        %1062 = vmatprep.subr.mxu0 0.0
        %1063 = vmatpush1.msra.mxu0 0.0
        %1064 = vmatprep.subr.mxu0 0.0
        %1065 = vmatpush1.msra.mxu0 0.0
        %1066 = vmatprep.subr.mxu0 0.0
        %1067 = vmatpush1.msra.mxu0 0.0
        %1068 = vmatprep.subr.mxu0 0.0
        %1069 = vmatpush1.msra.mxu0 0.0
        %1070 = vmatprep.subr.mxu0 0.0
        %1071 = vmatpush1.msra.mxu0 0.0
        %1072 = vmatprep.subr.mxu0 0.0
        %1073 = vmatpush1.msra.mxu0 0.0
        %1074 = vmatprep.subr.mxu0 0.0
        %1075 = vmatpush1.msra.mxu0 0.0
        %1076 = vmatprep.subr.mxu0 0.0
        %1077 = vmatpush1.msra.mxu0 0.0
        %1078 = vmatprep.subr.mxu0 0.0
        %1079 = vmatpush1.msra.mxu0 0.0
        %1080 = vmatprep.subr.mxu0 0.0
        %1081 = vmatpush1.msra.mxu0 0.0
        %1082 = vmatprep.subr.mxu0 0.0
        %1083 = vmatpush1.msra.mxu0 0.0
        %1084 = vmatprep.subr.mxu0 0.0
        %1085 = vmatpush1.msra.mxu0 0.0
        %1086 = vmatprep.subr.mxu0 0.0
        %1087 = vmatpush1.msra.mxu0 %v956
        %1088 = vmatprep.subr.mxu0 0.0
        %1089 = vmatpush2.msra.mxu0 0.0
        %1090 = vmatprep.subr.mxu0 0.0
        %1091 = vmatpush2.msra.mxu0 0.0
        %1092 = vmatprep.subr.mxu0 0.0
        %1093 = vmatpush2.msra.mxu0 0.0
        %1094 = vmatprep.subr.mxu0 0.0
        %1095 = vmatpush2.msra.mxu0 0.0
        %1096 = vmatprep.subr.mxu0 0.0
        %1097 = vmatpush2.msra.mxu0 0.0
        %1098 = vmatprep.subr.mxu0 0.0
        %1099 = vmatpush2.msra.mxu0 0.0
        %1100 = vmatprep.subr.mxu0 0.0
        %1101 = vmatpush2.msra.mxu0 0.0
        %1102 = vmatprep.subr.mxu0 0.0
        %1103 = vmatpush2.msra.mxu0 0.0
        %1104 = vmatprep.subr.mxu0 0.0
        %1105 = vmatpush2.msra.mxu0 0.0
        %1106 = vmatprep.subr.mxu0 0.0
        %1107 = vmatpush2.msra.mxu0 0.0
        %1108 = vmatprep.subr.mxu0 0.0
        %1109 = vmatpush2.msra.mxu0 0.0
        %1110 = vmatprep.subr.mxu0 0.0
        %1111 = vmatpush2.msra.mxu0 0.0
        %1112 = vmatprep.subr.mxu0 0.0
        %1113 = vmatpush2.msra.mxu0 0.0
        %1114 = vmatprep.subr.mxu0 0.0
        %1115 = vmatpush2.msra.mxu0 0.0
        %1116 = vmatprep.subr.mxu0 0.0
        %1117 = vmatpush2.msra.mxu0 0.0
        %1118 = vmatprep.subr.mxu0 0.0
        %1119 = vmatpush2.msra.mxu0 0.0
        %1120 = vmatprep.mubr.f32.mxu0 0.0
        %1121 = vmatmul.mubr.f32.gmra.mxu0 %v1054
        %v1122 = vpop.f32.mrf.mxu0
        %v1123 = vadd.f32 0.0, %v1122
        %v1124 = vpop.f32.mrf.mxu0
        %1125 = vdwg.mxu0
        %v1126 = vsel %vm664, %v1123, 0.0
        %1127 = vadd.xlane.f32.xlu0 %v1126
        %v1128 = vpop.xlane.xlu0 %1127
        %v1129 = vmul.f32 %v1128, %v668
        %v1130 = vsub.f32 %v1123, %v1129
        %v1131 = vmul.f32 %v1130, %v1130
        %v1132 = vsel %vm664, %v1131, 0.0
        %1133 = vadd.xlane.f32.xlu0 %v1132
        %v1134 = vpop.xlane.xlu0 %1133
        %v1135 = vmul.f32 %v1134, %v668
        %v1136 = vadd.f32 %v1135, 1e-05
        %v1137 = vrsqrt.pop %v1136
        %v1138 = vmul.f32 %v1130, %v1137
        %v1139 = vlaneseq
        %v1140 = vshrl.u32 %v1139, 7
        %v1141 = vsub.s32 0, %v1140
        %v1142 = vrot.slane %v959, %v1141
        %v1143 = vmul.f32 %v1138, %v1142
        %v1144 = vlaneseq
        %v1145 = vshrl.u32 %v1144, 7
        %v1146 = vsub.s32 0, %v1145
        %v1147 = vrot.slane %v960, %v1146
        %v1148 = vadd.f32 %v1143, %v1147
        %v1149 = vmax.f32 %v1148, 0.0
        %v1150 = vadd.f32 %v1149, 0.0
        %1151 = vrot.lane.b32.xlu0 %v882, 112
        %v1152 = vpop.permute.xlu0 %1151
        %1153 = vrot.lane.b32.xlu0 %v882, 80
        %v1154 = vpop.permute.xlu0 %1153
        %v1155 = vsel %vm964, %v1152, 0
        %v1157 = vsel %vm964, %v1154, 0
        %1159 = vmatprep.subr.mxu0 0.0
        %1160 = vmatpush1.xpose.msra.mxu0 0.0
        %1161 = vmatprep.subr.mxu0 0.0
        %1162 = vmatpush1.xpose.msra.mxu0 0.0
        %1163 = vmatprep.subr.mxu0 0.0
        %1164 = vmatpush1.xpose.msra.mxu0 0.0
        %1165 = vmatprep.subr.mxu0 0.0
        %1166 = vmatpush1.xpose.msra.mxu0 0.0
        %1167 = vmatprep.subr.mxu0 0.0
        %1168 = vmatpush1.xpose.msra.mxu0 0.0
        %1169 = vmatprep.subr.mxu0 0.0
        %1170 = vmatpush1.xpose.msra.mxu0 0.0
        %1171 = vmatprep.subr.mxu0 0.0
        %1172 = vmatpush1.xpose.msra.mxu0 0.0
        %1173 = vmatprep.subr.mxu0 0.0
        %1174 = vmatpush1.xpose.msra.mxu0 0.0
        %1175 = vmatprep.subr.mxu0 0.0
        %1176 = vmatpush1.xpose.msra.mxu0 0.0
        %1177 = vmatprep.subr.mxu0 0.0
        %1178 = vmatpush1.xpose.msra.mxu0 0.0
        %1179 = vmatprep.subr.mxu0 0.0
        %1180 = vmatpush1.xpose.msra.mxu0 0.0
        %1181 = vmatprep.subr.mxu0 0.0
        %1182 = vmatpush1.xpose.msra.mxu0 0.0
        %1183 = vmatprep.subr.mxu0 0.0
        %1184 = vmatpush1.xpose.msra.mxu0 0.0
        %1185 = vmatprep.subr.mxu0 0.0
        %1186 = vmatpush1.xpose.msra.mxu0 0.0
        %1187 = vmatprep.subr.mxu0 0.0
        %1188 = vmatpush1.xpose.msra.mxu0 0.0
        %1189 = vmatprep.subr.mxu0 0.0
        %1190 = vmatpush1.xpose.msra.mxu0 %v1157
        %1191 = vmatprep.subr.mxu0 0.0
        %1192 = vmatpush2.xpose.msra.mxu0 0.0
        %1193 = vmatprep.subr.mxu0 0.0
        %1194 = vmatpush2.xpose.msra.mxu0 0.0
        %1195 = vmatprep.subr.mxu0 0.0
        %1196 = vmatpush2.xpose.msra.mxu0 0.0
        %1197 = vmatprep.subr.mxu0 0.0
        %1198 = vmatpush2.xpose.msra.mxu0 0.0
        %1199 = vmatprep.subr.mxu0 0.0
        %1200 = vmatpush2.xpose.msra.mxu0 0.0
        %1201 = vmatprep.subr.mxu0 0.0
        %1202 = vmatpush2.xpose.msra.mxu0 0.0
        %1203 = vmatprep.subr.mxu0 0.0
        %1204 = vmatpush2.xpose.msra.mxu0 0.0
        %1205 = vmatprep.subr.mxu0 0.0
        %1206 = vmatpush2.xpose.msra.mxu0 0.0
        %1207 = vmatprep.subr.mxu0 0.0
        %1208 = vmatpush2.xpose.msra.mxu0 0.0
        %1209 = vmatprep.subr.mxu0 0.0
        %1210 = vmatpush2.xpose.msra.mxu0 0.0
        %1211 = vmatprep.subr.mxu0 0.0
        %1212 = vmatpush2.xpose.msra.mxu0 0.0
        %1213 = vmatprep.subr.mxu0 0.0
        %1214 = vmatpush2.xpose.msra.mxu0 0.0
        %1215 = vmatprep.subr.mxu0 0.0
        %1216 = vmatpush2.xpose.msra.mxu0 0.0
        %1217 = vmatprep.subr.mxu0 0.0
        %1218 = vmatpush2.xpose.msra.mxu0 0.0
        %1219 = vmatprep.subr.mxu0 0.0
        %1220 = vmatpush2.xpose.msra.mxu0 0.0
        %1221 = vmatprep.subr.mxu0 0.0
        %1222 = vmatpush2.xpose.msra.mxu0 0.0
        %1223 = vmatprep.mubr.f32.mxu0 0.0
        %1224 = vmatmul.mubr.f32.gmra.mxu0 %v1155
        %v1225 = vpop.f32.mrf.mxu0
        %v1226 = vadd.f32 0.0, %v1225
        %v1227 = vpop.f32.mrf.mxu0
        %1228 = vdwg.mxu0
        %v1229 = vmul.f32 %v1226, 0.25
        %v1230 = vsel %vm800, -1e+09, %v1229
        %v1231 = vsel %vm1041, %v1230, -inf
        %1232 = vmax.xlane.f32.xlu0 %v1231
        %v1233 = vpop.xlane.xlu0 %1232
        %v1234 = vsub.f32 %v1230, %v1233
        %v1235 = vmul.f32 %v1234, 1.442695
        %v1236 = vpow.pop %v1235
        %v1237 = vsel %vm1041, %v1236, 0.0
        %1238 = vadd.xlane.f32.xlu0 %v1237
        %v1239 = vpop.xlane.xlu0 %1238
        %v1240 = vrcp.pop %v1239
        %v1241 = vmul.f32 %v1236, %v1240
        %1243 = vrot.lane.b32.xlu0 %v956, 96
        %v1244 = vpop.permute.xlu0 %1243
        %v1247 = vsel %vm1041, %v1241, 0
        %1249 = vmatprep.subr.mxu0 0.0
        %1250 = vmatpush1.msra.mxu0 0.0
        %1251 = vmatprep.subr.mxu0 0.0
        %1252 = vmatpush1.msra.mxu0 0.0
        %1253 = vmatprep.subr.mxu0 0.0
        %1254 = vmatpush1.msra.mxu0 0.0
        %1255 = vmatprep.subr.mxu0 0.0
        %1256 = vmatpush1.msra.mxu0 0.0
        %1257 = vmatprep.subr.mxu0 0.0
        %1258 = vmatpush1.msra.mxu0 0.0
        %1259 = vmatprep.subr.mxu0 0.0
        %1260 = vmatpush1.msra.mxu0 0.0
        %1261 = vmatprep.subr.mxu0 0.0
        %1262 = vmatpush1.msra.mxu0 0.0
        %1263 = vmatprep.subr.mxu0 0.0
        %1264 = vmatpush1.msra.mxu0 0.0
        %1265 = vmatprep.subr.mxu0 0.0
        %1266 = vmatpush1.msra.mxu0 0.0
        %1267 = vmatprep.subr.mxu0 0.0
        %1268 = vmatpush1.msra.mxu0 0.0
        %1269 = vmatprep.subr.mxu0 0.0
        %1270 = vmatpush1.msra.mxu0 0.0
        %1271 = vmatprep.subr.mxu0 0.0
        %1272 = vmatpush1.msra.mxu0 0.0
        %1273 = vmatprep.subr.mxu0 0.0
        %1274 = vmatpush1.msra.mxu0 0.0
        %1275 = vmatprep.subr.mxu0 0.0
        %1276 = vmatpush1.msra.mxu0 0.0
        %1277 = vmatprep.subr.mxu0 0.0
        %1278 = vmatpush1.msra.mxu0 0.0
        %1279 = vmatprep.subr.mxu0 0.0
        %1280 = vmatpush1.msra.mxu0 %v1244
        %1281 = vmatprep.subr.mxu0 0.0
        %1282 = vmatpush2.msra.mxu0 0.0
        %1283 = vmatprep.subr.mxu0 0.0
        %1284 = vmatpush2.msra.mxu0 0.0
        %1285 = vmatprep.subr.mxu0 0.0
        %1286 = vmatpush2.msra.mxu0 0.0
        %1287 = vmatprep.subr.mxu0 0.0
        %1288 = vmatpush2.msra.mxu0 0.0
        %1289 = vmatprep.subr.mxu0 0.0
        %1290 = vmatpush2.msra.mxu0 0.0
        %1291 = vmatprep.subr.mxu0 0.0
        %1292 = vmatpush2.msra.mxu0 0.0
        %1293 = vmatprep.subr.mxu0 0.0
        %1294 = vmatpush2.msra.mxu0 0.0
        %1295 = vmatprep.subr.mxu0 0.0
        %1296 = vmatpush2.msra.mxu0 0.0
        %1297 = vmatprep.subr.mxu0 0.0
        %1298 = vmatpush2.msra.mxu0 0.0
        %1299 = vmatprep.subr.mxu0 0.0
        %1300 = vmatpush2.msra.mxu0 0.0
        %1301 = vmatprep.subr.mxu0 0.0
        %1302 = vmatpush2.msra.mxu0 0.0
        %1303 = vmatprep.subr.mxu0 0.0
        %1304 = vmatpush2.msra.mxu0 0.0
        %1305 = vmatprep.subr.mxu0 0.0
        %1306 = vmatpush2.msra.mxu0 0.0
        %1307 = vmatprep.subr.mxu0 0.0
        %1308 = vmatpush2.msra.mxu0 0.0
        %1309 = vmatprep.subr.mxu0 0.0
        %1310 = vmatpush2.msra.mxu0 0.0
        %1311 = vmatprep.subr.mxu0 0.0
        %1312 = vmatpush2.msra.mxu0 0.0
        %1313 = vmatprep.mubr.f32.mxu0 0.0
        %1314 = vmatmul.mubr.f32.gmra.mxu0 %v1247
        %v1315 = vpop.f32.mrf.mxu0
        %v1316 = vadd.f32 0.0, %v1315
        %v1317 = vpop.f32.mrf.mxu0
        %1318 = vdwg.mxu0
        %v1319 = vsel %vm664, %v1316, 0.0
        %1320 = vadd.xlane.f32.xlu0 %v1319
        %v1321 = vpop.xlane.xlu0 %1320
        %v1322 = vmul.f32 %v1321, %v668
        %v1323 = vsub.f32 %v1316, %v1322
        %v1324 = vmul.f32 %v1323, %v1323
        %v1325 = vsel %vm664, %v1324, 0.0
        %1326 = vadd.xlane.f32.xlu0 %v1325
        %v1327 = vpop.xlane.xlu0 %1326
        %v1328 = vmul.f32 %v1327, %v668
        %v1329 = vadd.f32 %v1328, 1e-05
        %v1330 = vrsqrt.pop %v1329
        %v1331 = vmul.f32 %v1323, %v1330
        %v1332 = vlaneseq
        %v1333 = vshrl.u32 %v1332, 7
        %v1334 = vsub.s32 1, %v1333
        %v1335 = vrot.slane %v959, %v1334
        %v1336 = vmul.f32 %v1331, %v1335
        %v1337 = vlaneseq
        %v1338 = vshrl.u32 %v1337, 7
        %v1339 = vsub.s32 1, %v1338
        %v1340 = vrot.slane %v960, %v1339
        %v1341 = vadd.f32 %v1336, %v1340
        %v1342 = vmax.f32 %v1341, 0.0
        %v1343 = vadd.f32 %v1150, %v1342
        %v1344 = vadd.f32 %v1343, %v695
        %v1345 = vld [vmem:[%s11] sm:$0xff]
        %v1346 = vld [vmem:[%s11 + $0x8] sm:$0xff]
        %v1347 = vld [vmem:[%s11 + $0x10] sm:$0xff]
        %v1348 = vld [vmem:[%s11 + $0x18] sm:$0xff]
        %v1349 = vld [vmem:[#allocation6] sm:$0x1]
        %v1351 = vlaneseq
        %v1352 = vshrl.u32 %v1351, 7
        %v1353 = vsub.s32 0, %v1352
        %v1354 = vrot.slane %v1349, %v1353
        %v1357 = vsel %vm664, %v1344, 0
        %1359 = vmatprep.subr.mxu0 0.0
        %1360 = vmatpush1.msra.mxu0 0.0
        %1361 = vmatprep.subr.mxu0 0.0
        %1362 = vmatpush1.msra.mxu0 0.0
        %1363 = vmatprep.subr.mxu0 0.0
        %1364 = vmatpush1.msra.mxu0 0.0
        %1365 = vmatprep.subr.mxu0 0.0
        %1366 = vmatpush1.msra.mxu0 0.0
        %1367 = vmatprep.subr.mxu0 0.0
        %1368 = vmatpush1.msra.mxu0 0.0
        %1369 = vmatprep.subr.mxu0 0.0
        %1370 = vmatpush1.msra.mxu0 0.0
        %1371 = vmatprep.subr.mxu0 0.0
        %1372 = vmatpush1.msra.mxu0 0.0
        %1373 = vmatprep.subr.mxu0 0.0
        %1374 = vmatpush1.msra.mxu0 0.0
        %1375 = vmatprep.subr.mxu0 0.0
        %1376 = vmatpush1.msra.mxu0 0.0
        %1377 = vmatprep.subr.mxu0 0.0
        %1378 = vmatpush1.msra.mxu0 0.0
        %1379 = vmatprep.subr.mxu0 0.0
        %1380 = vmatpush1.msra.mxu0 0.0
        %1381 = vmatprep.subr.mxu0 0.0
        %1382 = vmatpush1.msra.mxu0 0.0
        %1383 = vmatprep.subr.mxu0 0.0
        %1384 = vmatpush1.msra.mxu0 %v1348
        %1385 = vmatprep.subr.mxu0 0.0
        %1386 = vmatpush1.msra.mxu0 %v1347
        %1387 = vmatprep.subr.mxu0 0.0
        %1388 = vmatpush1.msra.mxu0 %v1346
        %1389 = vmatprep.subr.mxu0 0.0
        %1390 = vmatpush1.msra.mxu0 %v1345
        %1391 = vmatprep.subr.mxu0 0.0
        %1392 = vmatpush2.msra.mxu0 0.0
        %1393 = vmatprep.subr.mxu0 0.0
        %1394 = vmatpush2.msra.mxu0 0.0
        %1395 = vmatprep.subr.mxu0 0.0
        %1396 = vmatpush2.msra.mxu0 0.0
        %1397 = vmatprep.subr.mxu0 0.0
        %1398 = vmatpush2.msra.mxu0 0.0
        %1399 = vmatprep.subr.mxu0 0.0
        %1400 = vmatpush2.msra.mxu0 0.0
        %1401 = vmatprep.subr.mxu0 0.0
        %1402 = vmatpush2.msra.mxu0 0.0
        %1403 = vmatprep.subr.mxu0 0.0
        %1404 = vmatpush2.msra.mxu0 0.0
        %1405 = vmatprep.subr.mxu0 0.0
        %1406 = vmatpush2.msra.mxu0 0.0
        %1407 = vmatprep.subr.mxu0 0.0
        %1408 = vmatpush2.msra.mxu0 0.0
        %1409 = vmatprep.subr.mxu0 0.0
        %1410 = vmatpush2.msra.mxu0 0.0
        %1411 = vmatprep.subr.mxu0 0.0
        %1412 = vmatpush2.msra.mxu0 0.0
        %1413 = vmatprep.subr.mxu0 0.0
        %1414 = vmatpush2.msra.mxu0 0.0
        %1415 = vmatprep.subr.mxu0 0.0
        %1416 = vmatpush2.msra.mxu0 0.0
        %1417 = vmatprep.subr.mxu0 0.0
        %1418 = vmatpush2.msra.mxu0 0.0
        %1419 = vmatprep.subr.mxu0 0.0
        %1420 = vmatpush2.msra.mxu0 0.0
        %1421 = vmatprep.subr.mxu0 0.0
        %1422 = vmatpush2.msra.mxu0 0.0
        %1423 = vmatprep.mubr.f32.mxu0 0.0
        %1424 = vmatmul.mubr.f32.gmra.mxu0 %v1357
        %v1425 = vpop.f32.mrf.mxu0
        %v1426 = vadd.f32 %v1354, %v1425
        %v1427 = vpop.f32.mrf.mxu0
        %1428 = vdwg.mxu0
        %v1430 = vrot.slane %v1426, 4
        %v1432 = vadd.f32 %v1426, %v1430
        %v1433 = vmul.f32 %v1432, 0.5
        %v1434 = vrot.slane %v1344, 1
        %v1436 = vmax.f32 %v1344, %v1434
        %v1437 = vrot.slane %v1344, 2
        %v1439 = vmax.f32 %v1436, %v1437
        %v1440 = vrot.slane %v1344, 3
        %v1442 = vmax.f32 %v1439, %v1440
        %v1444 = vrot.slane %v1442, 3
        %vm1446 = vcmask 1040384
        %v1447 = vsel %vm1446, %v1442, %v1444
        %v1448 = vld [vmem:[#allocation7] sm:$0xff]
        %v1449 = vld [vmem:[#allocation7 + $0x8] sm:$0xff]
        %v1450 = vld [vmem:[#allocation7 + $0x10] sm:$0xff]
        %v1451 = vld [vmem:[#allocation7 + $0x18] sm:$0xff]
        %v1452 = vld [vmem:[%s14] sm:$0x1]
        %v1454 = vlaneseq
        %v1455 = vshrl.u32 %v1454, 7
        %v1456 = vsub.s32 0, %v1455
        %v1457 = vrot.slane %v1452, %v1456
        %v1460 = vsel %vm664, %v1447, 0
        %1462 = vmatprep.subr.mxu0 0.0
        %1463 = vmatpush1.msra.mxu0 0.0
        %1464 = vmatprep.subr.mxu0 0.0
        %1465 = vmatpush1.msra.mxu0 0.0
        %1466 = vmatprep.subr.mxu0 0.0
        %1467 = vmatpush1.msra.mxu0 0.0
        %1468 = vmatprep.subr.mxu0 0.0
        %1469 = vmatpush1.msra.mxu0 0.0
        %1470 = vmatprep.subr.mxu0 0.0
        %1471 = vmatpush1.msra.mxu0 0.0
        %1472 = vmatprep.subr.mxu0 0.0
        %1473 = vmatpush1.msra.mxu0 0.0
        %1474 = vmatprep.subr.mxu0 0.0
        %1475 = vmatpush1.msra.mxu0 0.0
        %1476 = vmatprep.subr.mxu0 0.0
        %1477 = vmatpush1.msra.mxu0 0.0
        %1478 = vmatprep.subr.mxu0 0.0
        %1479 = vmatpush1.msra.mxu0 0.0
        %1480 = vmatprep.subr.mxu0 0.0
        %1481 = vmatpush1.msra.mxu0 0.0
        %1482 = vmatprep.subr.mxu0 0.0
        %1483 = vmatpush1.msra.mxu0 0.0
        %1484 = vmatprep.subr.mxu0 0.0
        %1485 = vmatpush1.msra.mxu0 0.0
        %1486 = vmatprep.subr.mxu0 0.0
        %1487 = vmatpush1.msra.mxu0 %v1451
        %1488 = vmatprep.subr.mxu0 0.0
        %1489 = vmatpush1.msra.mxu0 %v1450
        %1490 = vmatprep.subr.mxu0 0.0
        %1491 = vmatpush1.msra.mxu0 %v1449
        %1492 = vmatprep.subr.mxu0 0.0
        %1493 = vmatpush1.msra.mxu0 %v1448
        %1494 = vmatprep.subr.mxu0 0.0
        %1495 = vmatpush2.msra.mxu0 0.0
        %1496 = vmatprep.subr.mxu0 0.0
        %1497 = vmatpush2.msra.mxu0 0.0
        %1498 = vmatprep.subr.mxu0 0.0
        %1499 = vmatpush2.msra.mxu0 0.0
        %1500 = vmatprep.subr.mxu0 0.0
        %1501 = vmatpush2.msra.mxu0 0.0
        %1502 = vmatprep.subr.mxu0 0.0
        %1503 = vmatpush2.msra.mxu0 0.0
        %1504 = vmatprep.subr.mxu0 0.0
        %1505 = vmatpush2.msra.mxu0 0.0
        %1506 = vmatprep.subr.mxu0 0.0
        %1507 = vmatpush2.msra.mxu0 0.0
        %1508 = vmatprep.subr.mxu0 0.0
        %1509 = vmatpush2.msra.mxu0 0.0
        %1510 = vmatprep.subr.mxu0 0.0
        %1511 = vmatpush2.msra.mxu0 0.0
        %1512 = vmatprep.subr.mxu0 0.0
        %1513 = vmatpush2.msra.mxu0 0.0
        %1514 = vmatprep.subr.mxu0 0.0
        %1515 = vmatpush2.msra.mxu0 0.0
        %1516 = vmatprep.subr.mxu0 0.0
        %1517 = vmatpush2.msra.mxu0 0.0
        %1518 = vmatprep.subr.mxu0 0.0
        %1519 = vmatpush2.msra.mxu0 0.0
        %1520 = vmatprep.subr.mxu0 0.0
        %1521 = vmatpush2.msra.mxu0 0.0
        %1522 = vmatprep.subr.mxu0 0.0
        %1523 = vmatpush2.msra.mxu0 0.0
        %1524 = vmatprep.subr.mxu0 0.0
        %1525 = vmatpush2.msra.mxu0 0.0
        %1526 = vmatprep.mubr.f32.mxu0 0.0
        %1527 = vmatmul.mubr.f32.gmra.mxu0 %v1460
        %v1528 = vpop.f32.mrf.mxu0
        %v1529 = vadd.f32 %v1457, %v1528
        %v1530 = vpop.f32.mrf.mxu0
        %1531 = vdwg.mxu0
        %v1533 = vrot.slane %v1529, 1
        %v1535 = vadd.f32 %v1529, %v1533
        %v1536 = vmul.f32 %v1535, 0.5
        %v1538 = vrot.slane %v1536, 4
        %vm1540 = vcmask 1043456
        %v1541 = vsel %vm1540, %v1433, %v1538
        %vm1542 = vcmask 1044480
        %v1543 = vsel %vm1542, %v1541, 0.0
        %1544 = vst [vmem:[%s573] sm:$0xff] %v1543
        %p1545 = scmp.lt.s32.totalorder %s33, 1
        %s1546 = scalar_select %p1545, %s33, 1
        %s1547 = smul.addr %s1546, 8
        %s1548 = scalar_lea.vmem %s15, %s1547
        // Predicated region
        $region97: #{gcnnet_collective_forward.1} parent=79 // pred_check
          %p1549 = pneg %p376
        $region98: #{gcnnet_collective_forward.1} parent=79 // pred_check_branch
          %1551 = sbr.rel (%p1549) target = $region100
        $region99: #{gcnnet_collective_forward.1} parent=79 // pred_region
          _
        $region100: #{gcnnet_collective_forward.1} parent=79 // pred_fallthru
          _
      $region80: #{gcnnet_collective_forward.1} parent=5 // pred_fallthru
        _
      %p1552 = scmp.le.s32.totalorder 2, %s28
      // Predicated region
      $region101: #{gcnnet_collective_forward.1} parent=5 // pred_check
        %p1553 = pneg %p1552
      $region102: #{gcnnet_collective_forward.1} parent=5 // pred_check_branch
        %1555 = sbr.rel (%p1553) target = $region104
      $region103: #{gcnnet_collective_forward.1} parent=5 // pred_region
        %s1556 = ssub.s32 %s28, 2
        // Predicated region
        $region105: #{gcnnet_collective_forward.1} parent=103 // pred_check
          %p1557 = pneg %p382
        $region106: #{gcnnet_collective_forward.1} parent=103 // pred_check_branch
          %1559 = sbr.rel (%p1557) target = $region108
        $region107: #{gcnnet_collective_forward.1} parent=103 // pred_region
          %p1560 = scmp.lt.s32.totalorder %s34, 1
          %s1561 = scalar_select %p1560, %s34, 1
          %s1562 = smul.addr %s1561, 8
          %s1563 = scalar_lea.vmem %s15, %s1562
        $region108: #{gcnnet_collective_forward.1} parent=103 // pred_fallthru
          _
      $region104: #{gcnnet_collective_forward.1} parent=5 // pred_fallthru
        _
    $region6: #{gcnnet_collective_forward.1} parent=1 // loop_footer
      %s32 = sadd.s32 1, %s28
    $region7: #{gcnnet_collective_forward.1} parent=1 // loop_footer_branch
      %27 = sbr.rel target = $region3
    $region8: #{gcnnet_collective_forward.1} parent=1 // loop_exit
      _
    %1564 = vsyncpa [#allocation3], 1
    %s1565 = scalar_lea.sflag [#allocation3], 1
    %1566 = vsyncpa %s1565, 1
    %1567 = vsyncpa [#allocation5], 1
    %s1568 = scalar_lea.sflag [#allocation5], 1
    %1569 = vsyncpa %s1568, 1
    %1570 = vsyncpa [#allocation8], 1

</llo_original>
